<compile_context>
chip_gen: v7x
topology: tpu7x:2x2x1
jax: 0.10.0
libtpu: 0.0.40
codegen_flags: <defaults>
</compile_context>

<pallas_src>
import math

import jax
import jax.numpy as jnp
from jax import lax
from jax.experimental import pallas as pl
from jax.experimental.pallas import tpu as pltpu

BN_EPS = 1e-5
_HALO = 8   # sublane-aligned offset of the "real" rows inside the padded conv scratch


def _fill_padded(scr_ref, val, pad):
    """Store `val` (B, L, C) into scr_ref at sublane-aligned offset _HALO and zero ONLY the
    `pad` halo rows on each side (rows outside [_HALO-pad, _HALO+L+pad) are never read)."""
    b, l, c = val.shape
    zeros = jnp.zeros((b, pad, c), jnp.float32)
    scr_ref[:, _HALO - pad:_HALO, :] = zeros                 # left halo
    scr_ref[:, _HALO + l:_HALO + l + pad, :] = zeros         # right halo
    scr_ref[:, _HALO:_HALO + l, :] = val                     # interior (8-aligned store)


def _conv_taps(scr_ref, length, ksize, w_ref, bias_ref):
    """'same'-padded Conv1d as `ksize` accumulated (N, C) @ (C, C) GEMMs (no im2col concat)."""
    pad = (ksize - 1) // 2
    h = bias_ref[...]                                        # (1, C); broadcasts on first add
    for k in range(ksize):                                   # static unroll
        start = _HALO - pad + k
        win = scr_ref[:, start:start + length, :]            # (B, L, C) shifted window
        h = h + jnp.dot(win.reshape(-1, win.shape[-1]), w_ref[k],
                        preferred_element_type=jnp.float32)
    return h                                                 # (B*L, C)


def residual_block_kernel(x_ref, w15_ref, b15_ref, gamma_ref, beta_ref,
                          w3_ref, b3_ref, sew1_ref, sew2_ref, out_ref, pad_scr):
    B, L, C = x_ref.shape

    # Load x fully up front: keeps input_output_aliases={0: 0} on the residual path safe.
    x = x_ref[...]                                           # (B, L, C)

    # ---- Conv1d(k=5, p=2) with Conv1d(k=1) pre-folded into its weights ------
    _fill_padded(pad_scr, x, pad=2)
    h = _conv_taps(pad_scr, L, 5, w15_ref, b15_ref)          # (N, C)

    # ---- BatchNorm1d (train-mode batch stats, biased var), folded, + Swish --
    mean = jnp.mean(h, axis=0, keepdims=True)                # (1, C)
    d = h - mean
    var = jnp.mean(d * d, axis=0, keepdims=True)             # biased variance
    bn_scale = lax.rsqrt(var + BN_EPS) * gamma_ref[...]
    bn_bias = beta_ref[...] - mean * bn_scale
    h = h * bn_scale + bn_bias
    h = h * jax.nn.sigmoid(h)                                # Swish (f32 on the EUP)

    # ---- Conv1d(k=3, p=1): reuse the same scratch (all k=5 windows consumed) -
    _fill_padded(pad_scr, h.reshape(B, L, C), pad=1)
    h3 = _conv_taps(pad_scr, L, 3, w3_ref, b3_ref)           # (N, C)
    h3b = h3.reshape(B, L, C)

    # ---- SELayer, batched over B: pool -> fc -> ReLU -> fc -> sigmoid -------
    y = jnp.mean(h3b, axis=1)                                # (B, C)
    z = jnp.maximum(jnp.dot(y, sew1_ref[...], preferred_element_type=jnp.float32), 0.0)
    s = jax.nn.sigmoid(jnp.dot(z, sew2_ref[...], preferred_element_type=jnp.float32))

    # ---- residual: x + 0.1 * (SE-scaled conv output) ------------------------
    out_ref[...] = x + 0.1 * (h3b * s[:, None, :])


@jax.jit
def residual_block(x_ncl, params):
    """x_ncl: (B, C, L) float32 (PyTorch Conv1d layout). Returns (B, C, L)."""
    w1, b1, w2, b2, gamma, beta, w3, b3, sew1, sew2 = params
    B, C, L = x_ncl.shape
    assert L % 8 == 0, "length must be a multiple of 8 for clean (B,L,C)<->(B*L,C) reshapes"

    # Fold Conv1d(k=1) into Conv1d(k=5): pure weight precompute, removes one GEMM per call.
    w15 = jnp.einsum('kcd,de->kce', w1, w2)                  # (5, C, C)
    b15 = b1 @ w2 + b2                                       # (1, C)

    x_blc = jnp.transpose(x_ncl, (0, 2, 1)).astype(jnp.float32)

    vmem = pl.BlockSpec(memory_space=pltpu.MemorySpace.VMEM)
    out_blc = pl.pallas_call(
        residual_block_kernel,
        out_shape=jax.ShapeDtypeStruct((B, L, C), jnp.float32),
        in_specs=[vmem] * 9,
        out_specs=vmem,
        # One shared conv scratch: interior at sublane-aligned offset _HALO, halos zeroed only.
        scratch_shapes=[pltpu.VMEM((B, L + 2 * _HALO, C), jnp.float32)],
        # Safe: x_ref is fully loaded before out_ref is written (single grid-less invocation).
        input_output_aliases={0: 0},
        # Explicit VMEM budget (fits comfortably inside v7x's 64 MiB physical VMEM).
        compiler_params=pltpu.CompilerParams(vmem_limit_bytes=32 * 1024 * 1024),
    )(x_blc, w15, b15, gamma, beta, w3, b3, sew1, sew2)

    return jnp.transpose(out_blc, (0, 2, 1))


def residual_block_ref(x_ncl, params):
    """Pure-JAX reference with the module's exact (unfused) math, for a correctness check."""
    w1, b1, w2, b2, gamma, beta, w3, b3, sew1, sew2 = params
    x = jnp.transpose(x_ncl, (0, 2, 1)).astype(jnp.float32)  # (B, L, C)
    B, L, C = x.shape

    def conv(h, w_t, bias, pad):
        k = w_t.shape[0]
        hp = jnp.pad(h, ((0, 0), (pad, pad), (0, 0)))
        out = jnp.zeros_like(h) + bias
        for kk in range(k):
            out = out + jnp.einsum('blc,cd->bld', hp[:, kk:kk + L, :], w_t[kk])
        return out

    h = conv(x, w1, b1, 2)
    h = jnp.einsum('blc,cd->bld', h, w2) + b2
    mean = jnp.mean(h, axis=(0, 1))
    var = jnp.mean((h - mean) ** 2, axis=(0, 1))
    h = (h - mean) / jnp.sqrt(var + BN_EPS) * gamma + beta
    h = h * jax.nn.sigmoid(h)
    h = conv(h, w3, b3, 1)
    y = jnp.mean(h, axis=1)                                   # (B, C)
    s = jax.nn.sigmoid(jnp.maximum(y @ sew1, 0.0) @ sew2)     # (B, C)
    h = h * s[:, None, :]
    out = x + 0.1 * h
    return jnp.transpose(out, (0, 2, 1))


if __name__ == "__main__":
    B, C, L = 2, 32, 16          # batch, channels (dim), sequence length
    Cr = C // 16                 # SELayer reduction=16

    key = jax.random.PRNGKey(0)
    ks = jax.random.split(key, 9)

    def uinit(k, shape, fan_in):
        bound = 1.0 / math.sqrt(fan_in)
        return jax.random.uniform(k, shape, jnp.float32, -bound, bound)

    # Conv weights stored pre-transposed as (kernel, Cin, Cout); biases as (1, C).
    w1 = uinit(ks[0], (5, C, C), C * 5)       # Conv1d(dim, dim, k=5, p=2)
    b1 = uinit(ks[1], (1, C), C * 5)
    w2 = uinit(ks[2], (C, C), C * 1)          # Conv1d(dim, dim, k=1)
    b2 = uinit(ks[3], (1, C), C * 1)
    gamma = jnp.ones((1, C), jnp.float32)     # BatchNorm1d affine init
    beta = jnp.zeros((1, C), jnp.float32)
    w3 = uinit(ks[4], (3, C, C), C * 3)       # Conv1d(dim, dim, k=3, p=1)
    b3 = uinit(ks[5], (1, C), C * 3)
    sew1 = uinit(ks[6], (C, Cr), C)           # Linear(C, C//16, bias=False).weight.T
    sew2 = uinit(ks[7], (Cr, C), Cr)          # Linear(C//16, C, bias=False).weight.T
    params = (w1, b1, w2, b2, gamma, beta, w3, b3, sew1, sew2)

    x = jax.random.normal(ks[8], (B, C, L), jnp.float32)   # PyTorch NCL input

    out = jax.block_until_ready(residual_block(x, params))
    ref = jax.block_until_ready(residual_block_ref(x, params))

    assert out.shape == x.shape
    max_err = float(jnp.max(jnp.abs(out - ref)))
    assert jnp.allclose(out, ref, rtol=2e-3, atol=2e-3), f"max_err={max_err}"
    print("KERNEL_OK")
</pallas_src>

<mosaic_0001>
module attributes {stable_mosaic.version = 11 : i64} {
  func.func @residual_block_kernel(%arg0: memref<2x16x32xf32, #tpu.memory_space<vmem>>, %arg1: memref<5x32x32xf32, #tpu.memory_space<vmem>>, %arg2: memref<1x32xf32, #tpu.memory_space<vmem>>, %arg3: memref<1x32xf32, #tpu.memory_space<vmem>>, %arg4: memref<1x32xf32, #tpu.memory_space<vmem>>, %arg5: memref<3x32x32xf32, #tpu.memory_space<vmem>>, %arg6: memref<1x32xf32, #tpu.memory_space<vmem>>, %arg7: memref<32x2xf32, #tpu.memory_space<vmem>>, %arg8: memref<2x32xf32, #tpu.memory_space<vmem>>, %arg9: memref<2x16x32xf32, #tpu.memory_space<vmem>>, %arg10: memref<2x32x32xf32, #tpu.memory_space<vmem>>) attributes {dimension_semantics = [], scalar_prefetch = 0 : i64, scratch_operands = 1 : i64, tpu.core_type = #tpu.core_type<tc>} {
    %c0 = arith.constant 0 : index
    %c0_0 = arith.constant 0 : index
    %c0_1 = arith.constant 0 : index
    %0 = vector.load %arg0[%c0, %c0_0, %c0_1] : memref<2x16x32xf32, #tpu.memory_space<vmem>>, vector<2x16x32xf32>
    %cst = arith.constant 0.000000e+00 : f32
    %1 = vector.broadcast %cst : f32 to vector<2x2x32xf32>
    %c0_2 = arith.constant 0 : index
    %c6 = arith.constant 6 : index
    %c0_3 = arith.constant 0 : index
    %2 = vector.load %arg10[%c0_2, %c6, %c0_3] : memref<2x32x32xf32, #tpu.memory_space<vmem>>, vector<2x2x32xf32>
    tpu.vector_store %arg10[%c0_2, %c6, %c0_3], %1 {strides = array<i32>} : memref<2x32x32xf32, #tpu.memory_space<vmem>>, vector<2x2x32xf32>,
    %c0_4 = arith.constant 0 : index
    %c24 = arith.constant 24 : index
    %c0_5 = arith.constant 0 : index
    %3 = vector.load %arg10[%c0_4, %c24, %c0_5] : memref<2x32x32xf32, #tpu.memory_space<vmem>>, vector<2x2x32xf32>
    tpu.vector_store %arg10[%c0_4, %c24, %c0_5], %1 {strides = array<i32>} : memref<2x32x32xf32, #tpu.memory_space<vmem>>, vector<2x2x32xf32>,
    %c0_6 = arith.constant 0 : index
    %c8 = arith.constant 8 : index
    %c0_7 = arith.constant 0 : index
    %4 = vector.load %arg10[%c0_6, %c8, %c0_7] : memref<2x32x32xf32, #tpu.memory_space<vmem>>, vector<2x16x32xf32>
    tpu.vector_store %arg10[%c0_6, %c8, %c0_7], %0 {strides = array<i32>} : memref<2x32x32xf32, #tpu.memory_space<vmem>>, vector<2x16x32xf32>,
    %c0_8 = arith.constant 0 : index
    %c0_9 = arith.constant 0 : index
    %5 = vector.load %arg2[%c0_8, %c0_9] : memref<1x32xf32, #tpu.memory_space<vmem>>, vector<1x32xf32>
    %c0_10 = arith.constant 0 : index
    %c6_11 = arith.constant 6 : index
    %c0_12 = arith.constant 0 : index
    %6 = vector.load %arg10[%c0_10, %c6_11, %c0_12] : memref<2x32x32xf32, #tpu.memory_space<vmem>>, vector<2x16x32xf32>
    %7 = vector.shape_cast %6 : vector<2x16x32xf32> to vector<32x32xf32>
    %c0_13 = arith.constant 0 : index
    %c0_14 = arith.constant 0 : index
    %c0_15 = arith.constant 0 : index
    %8 = vector.load %arg1[%c0_13, %c0_14, %c0_15] : memref<5x32x32xf32, #tpu.memory_space<vmem>>, vector<1x32x32xf32>
    %9 = vector.shape_cast %8 : vector<1x32x32xf32> to vector<32x32xf32>
    %cst_16 = arith.constant dense<0.000000e+00> : vector<32x32xf32>
    %10 = tpu.matmul %7, %9, %cst_16 {dimension_numbers = #tpu.dot_dimension_numbers<[1], [0], [0], [1], [0, 0, 1, 1], [], []>} : vector<32x32xf32>, vector<32x32xf32>, vector<32x32xf32> -> vector<32x32xf32>
    %11 = vector.broadcast %5 : vector<1x32xf32> to vector<32x32xf32>
    %12 = arith.addf %11, %10 : vector<32x32xf32>
    %c0_17 = arith.constant 0 : index
    %c7 = arith.constant 7 : index
    %c0_18 = arith.constant 0 : index
    %13 = vector.load %arg10[%c0_17, %c7, %c0_18] : memref<2x32x32xf32, #tpu.memory_space<vmem>>, vector<2x16x32xf32>
    %14 = vector.shape_cast %13 : vector<2x16x32xf32> to vector<32x32xf32>
    %c1 = arith.constant 1 : index
    %c0_19 = arith.constant 0 : index
    %c0_20 = arith.constant 0 : index
    %15 = vector.load %arg1[%c1, %c0_19, %c0_20] : memref<5x32x32xf32, #tpu.memory_space<vmem>>, vector<1x32x32xf32>
    %16 = vector.shape_cast %15 : vector<1x32x32xf32> to vector<32x32xf32>
    %cst_21 = arith.constant dense<0.000000e+00> : vector<32x32xf32>
    %17 = tpu.matmul %14, %16, %cst_21 {dimension_numbers = #tpu.dot_dimension_numbers<[1], [0], [0], [1], [0, 0, 1, 1], [], []>} : vector<32x32xf32>, vector<32x32xf32>, vector<32x32xf32> -> vector<32x32xf32>
    %18 = arith.addf %12, %17 : vector<32x32xf32>
    %c0_22 = arith.constant 0 : index
    %c8_23 = arith.constant 8 : index
    %c0_24 = arith.constant 0 : index
    %19 = vector.load %arg10[%c0_22, %c8_23, %c0_24] : memref<2x32x32xf32, #tpu.memory_space<vmem>>, vector<2x16x32xf32>
    %20 = vector.shape_cast %19 : vector<2x16x32xf32> to vector<32x32xf32>
    %c2 = arith.constant 2 : index
    %c0_25 = arith.constant 0 : index
    %c0_26 = arith.constant 0 : index
    %21 = vector.load %arg1[%c2, %c0_25, %c0_26] : memref<5x32x32xf32, #tpu.memory_space<vmem>>, vector<1x32x32xf32>
    %22 = vector.shape_cast %21 : vector<1x32x32xf32> to vector<32x32xf32>
    %cst_27 = arith.constant dense<0.000000e+00> : vector<32x32xf32>
    %23 = tpu.matmul %20, %22, %cst_27 {dimension_numbers = #tpu.dot_dimension_numbers<[1], [0], [0], [1], [0, 0, 1, 1], [], []>} : vector<32x32xf32>, vector<32x32xf32>, vector<32x32xf32> -> vector<32x32xf32>
    %24 = arith.addf %18, %23 : vector<32x32xf32>
    %c0_28 = arith.constant 0 : index
    %c9 = arith.constant 9 : index
    %c0_29 = arith.constant 0 : index
    %25 = vector.load %arg10[%c0_28, %c9, %c0_29] : memref<2x32x32xf32, #tpu.memory_space<vmem>>, vector<2x16x32xf32>
    %26 = vector.shape_cast %25 : vector<2x16x32xf32> to vector<32x32xf32>
    %c3 = arith.constant 3 : index
    %c0_30 = arith.constant 0 : index
    %c0_31 = arith.constant 0 : index
    %27 = vector.load %arg1[%c3, %c0_30, %c0_31] : memref<5x32x32xf32, #tpu.memory_space<vmem>>, vector<1x32x32xf32>
    %28 = vector.shape_cast %27 : vector<1x32x32xf32> to vector<32x32xf32>
    %cst_32 = arith.constant dense<0.000000e+00> : vector<32x32xf32>
    %29 = tpu.matmul %26, %28, %cst_32 {dimension_numbers = #tpu.dot_dimension_numbers<[1], [0], [0], [1], [0, 0, 1, 1], [], []>} : vector<32x32xf32>, vector<32x32xf32>, vector<32x32xf32> -> vector<32x32xf32>
    %30 = arith.addf %24, %29 : vector<32x32xf32>
    %c0_33 = arith.constant 0 : index
    %c10 = arith.constant 10 : index
    %c0_34 = arith.constant 0 : index
    %31 = vector.load %arg10[%c0_33, %c10, %c0_34] : memref<2x32x32xf32, #tpu.memory_space<vmem>>, vector<2x16x32xf32>
    %32 = vector.shape_cast %31 : vector<2x16x32xf32> to vector<32x32xf32>
    %c4 = arith.constant 4 : index
    %c0_35 = arith.constant 0 : index
    %c0_36 = arith.constant 0 : index
    %33 = vector.load %arg1[%c4, %c0_35, %c0_36] : memref<5x32x32xf32, #tpu.memory_space<vmem>>, vector<1x32x32xf32>
    %34 = vector.shape_cast %33 : vector<1x32x32xf32> to vector<32x32xf32>
    %cst_37 = arith.constant dense<0.000000e+00> : vector<32x32xf32>
    %35 = tpu.matmul %32, %34, %cst_37 {dimension_numbers = #tpu.dot_dimension_numbers<[1], [0], [0], [1], [0, 0, 1, 1], [], []>} : vector<32x32xf32>, vector<32x32xf32>, vector<32x32xf32> -> vector<32x32xf32>
    %36 = arith.addf %30, %35 : vector<32x32xf32>
    %cst_38 = arith.constant dense<0.000000e+00> : vector<32xf32>
    %37 = vector.multi_reduction <add>, %36, %cst_38 [0] : vector<32x32xf32> to vector<32xf32>
    %38 = vector.shape_cast %37 : vector<32xf32> to vector<1x32xf32>
    %cst_39 = arith.constant 3.200000e+01 : f32
    %39 = vector.broadcast %cst_39 : f32 to vector<1x32xf32>
    %40 = arith.divf %38, %39 : vector<1x32xf32>
    %41 = vector.broadcast %40 : vector<1x32xf32> to vector<32x32xf32>
    %42 = arith.subf %36, %41 : vector<32x32xf32>
    %43 = arith.mulf %42, %42 : vector<32x32xf32>
    %cst_40 = arith.constant dense<0.000000e+00> : vector<32xf32>
    %44 = vector.multi_reduction <add>, %43, %cst_40 [0] : vector<32x32xf32> to vector<32xf32>
    %45 = vector.shape_cast %44 : vector<32xf32> to vector<1x32xf32>
    %cst_41 = arith.constant 3.200000e+01 : f32
    %46 = vector.broadcast %cst_41 : f32 to vector<1x32xf32>
    %47 = arith.divf %45, %46 : vector<1x32xf32>
    %cst_42 = arith.constant 9.99999974E-6 : f32
    %48 = vector.broadcast %cst_42 : f32 to vector<1x32xf32>
    %49 = arith.addf %47, %48 : vector<1x32xf32>
    %50 = math.rsqrt %49 : vector<1x32xf32>
    %c0_43 = arith.constant 0 : index
    %c0_44 = arith.constant 0 : index
    %51 = vector.load %arg3[%c0_43, %c0_44] : memref<1x32xf32, #tpu.memory_space<vmem>>, vector<1x32xf32>
    %52 = arith.mulf %50, %51 : vector<1x32xf32>
    %c0_45 = arith.constant 0 : index
    %c0_46 = arith.constant 0 : index
    %53 = vector.load %arg4[%c0_45, %c0_46] : memref<1x32xf32, #tpu.memory_space<vmem>>, vector<1x32xf32>
    %54 = arith.mulf %40, %52 : vector<1x32xf32>
    %55 = arith.subf %53, %54 : vector<1x32xf32>
    %56 = vector.broadcast %52 : vector<1x32xf32> to vector<32x32xf32>
    %57 = arith.mulf %36, %56 : vector<32x32xf32>
    %58 = vector.broadcast %55 : vector<1x32xf32> to vector<32x32xf32>
    %59 = arith.addf %57, %58 : vector<32x32xf32>
    %60 = arith.negf %59 : vector<32x32xf32>
    %61 = math.exp %60 : vector<32x32xf32>
    %cst_47 = arith.constant 1.000000e+00 : f32
    %62 = vector.broadcast %cst_47 : f32 to vector<32x32xf32>
    %63 = arith.addf %62, %61 : vector<32x32xf32>
    %64 = arith.divf %62, %63 : vector<32x32xf32>
    %65 = arith.mulf %59, %64 : vector<32x32xf32>
    %66 = vector.shape_cast %65 : vector<32x32xf32> to vector<2x16x32xf32>
    %cst_48 = arith.constant 0.000000e+00 : f32
    %67 = vector.broadcast %cst_48 : f32 to vector<2x1x32xf32>
    %c0_49 = arith.constant 0 : index
    %c7_50 = arith.constant 7 : index
    %c0_51 = arith.constant 0 : index
    %68 = vector.load %arg10[%c0_49, %c7_50, %c0_51] : memref<2x32x32xf32, #tpu.memory_space<vmem>>, vector<2x1x32xf32>
    tpu.vector_store %arg10[%c0_49, %c7_50, %c0_51], %67 {strides = array<i32>} : memref<2x32x32xf32, #tpu.memory_space<vmem>>, vector<2x1x32xf32>,
    %c0_52 = arith.constant 0 : index
    %c24_53 = arith.constant 24 : index
    %c0_54 = arith.constant 0 : index
    %69 = vector.load %arg10[%c0_52, %c24_53, %c0_54] : memref<2x32x32xf32, #tpu.memory_space<vmem>>, vector<2x1x32xf32>
    tpu.vector_store %arg10[%c0_52, %c24_53, %c0_54], %67 {strides = array<i32>} : memref<2x32x32xf32, #tpu.memory_space<vmem>>, vector<2x1x32xf32>,
    %c0_55 = arith.constant 0 : index
    %c8_56 = arith.constant 8 : index
    %c0_57 = arith.constant 0 : index
    %70 = vector.load %arg10[%c0_55, %c8_56, %c0_57] : memref<2x32x32xf32, #tpu.memory_space<vmem>>, vector<2x16x32xf32>
    tpu.vector_store %arg10[%c0_55, %c8_56, %c0_57], %66 {strides = array<i32>} : memref<2x32x32xf32, #tpu.memory_space<vmem>>, vector<2x16x32xf32>,
    %c0_58 = arith.constant 0 : index
    %c0_59 = arith.constant 0 : index
    %71 = vector.load %arg6[%c0_58, %c0_59] : memref<1x32xf32, #tpu.memory_space<vmem>>, vector<1x32xf32>
    %c0_60 = arith.constant 0 : index
    %c7_61 = arith.constant 7 : index
    %c0_62 = arith.constant 0 : index
    %72 = vector.load %arg10[%c0_60, %c7_61, %c0_62] : memref<2x32x32xf32, #tpu.memory_space<vmem>>, vector<2x16x32xf32>
    %73 = vector.shape_cast %72 : vector<2x16x32xf32> to vector<32x32xf32>
    %c0_63 = arith.constant 0 : index
    %c0_64 = arith.constant 0 : index
    %c0_65 = arith.constant 0 : index
    %74 = vector.load %arg5[%c0_63, %c0_64, %c0_65] : memref<3x32x32xf32, #tpu.memory_space<vmem>>, vector<1x32x32xf32>
    %75 = vector.shape_cast %74 : vector<1x32x32xf32> to vector<32x32xf32>
    %cst_66 = arith.constant dense<0.000000e+00> : vector<32x32xf32>
    %76 = tpu.matmul %73, %75, %cst_66 {dimension_numbers = #tpu.dot_dimension_numbers<[1], [0], [0], [1], [0, 0, 1, 1], [], []>} : vector<32x32xf32>, vector<32x32xf32>, vector<32x32xf32> -> vector<32x32xf32>
    %77 = vector.broadcast %71 : vector<1x32xf32> to vector<32x32xf32>
    %78 = arith.addf %77, %76 : vector<32x32xf32>
    %c0_67 = arith.constant 0 : index
    %c8_68 = arith.constant 8 : index
    %c0_69 = arith.constant 0 : index
    %79 = vector.load %arg10[%c0_67, %c8_68, %c0_69] : memref<2x32x32xf32, #tpu.memory_space<vmem>>, vector<2x16x32xf32>
    %80 = vector.shape_cast %79 : vector<2x16x32xf32> to vector<32x32xf32>
    %c1_70 = arith.constant 1 : index
    %c0_71 = arith.constant 0 : index
    %c0_72 = arith.constant 0 : index
    %81 = vector.load %arg5[%c1_70, %c0_71, %c0_72] : memref<3x32x32xf32, #tpu.memory_space<vmem>>, vector<1x32x32xf32>
    %82 = vector.shape_cast %81 : vector<1x32x32xf32> to vector<32x32xf32>
    %cst_73 = arith.constant dense<0.000000e+00> : vector<32x32xf32>
    %83 = tpu.matmul %80, %82, %cst_73 {dimension_numbers = #tpu.dot_dimension_numbers<[1], [0], [0], [1], [0, 0, 1, 1], [], []>} : vector<32x32xf32>, vector<32x32xf32>, vector<32x32xf32> -> vector<32x32xf32>
    %84 = arith.addf %78, %83 : vector<32x32xf32>
    %c0_74 = arith.constant 0 : index
    %c9_75 = arith.constant 9 : index
    %c0_76 = arith.constant 0 : index
    %85 = vector.load %arg10[%c0_74, %c9_75, %c0_76] : memref<2x32x32xf32, #tpu.memory_space<vmem>>, vector<2x16x32xf32>
    %86 = vector.shape_cast %85 : vector<2x16x32xf32> to vector<32x32xf32>
    %c2_77 = arith.constant 2 : index
    %c0_78 = arith.constant 0 : index
    %c0_79 = arith.constant 0 : index
    %87 = vector.load %arg5[%c2_77, %c0_78, %c0_79] : memref<3x32x32xf32, #tpu.memory_space<vmem>>, vector<1x32x32xf32>
    %88 = vector.shape_cast %87 : vector<1x32x32xf32> to vector<32x32xf32>
    %cst_80 = arith.constant dense<0.000000e+00> : vector<32x32xf32>
    %89 = tpu.matmul %86, %88, %cst_80 {dimension_numbers = #tpu.dot_dimension_numbers<[1], [0], [0], [1], [0, 0, 1, 1], [], []>} : vector<32x32xf32>, vector<32x32xf32>, vector<32x32xf32> -> vector<32x32xf32>
    %90 = arith.addf %84, %89 : vector<32x32xf32>
    %91 = vector.shape_cast %90 : vector<32x32xf32> to vector<2x16x32xf32>
    %cst_81 = arith.constant dense<0.000000e+00> : vector<2x32xf32>
    %92 = vector.multi_reduction <add>, %91, %cst_81 [1] : vector<2x16x32xf32> to vector<2x32xf32>
    %cst_82 = arith.constant 1.600000e+01 : f32
    %93 = vector.broadcast %cst_82 : f32 to vector<2x32xf32>
    %94 = arith.divf %92, %93 : vector<2x32xf32>
    %c0_83 = arith.constant 0 : index
    %c0_84 = arith.constant 0 : index
    %95 = vector.load %arg7[%c0_83, %c0_84] : memref<32x2xf32, #tpu.memory_space<vmem>>, vector<32x2xf32>
    %cst_85 = arith.constant dense<0.000000e+00> : vector<2x2xf32>
    %96 = tpu.matmul %94, %95, %cst_85 {dimension_numbers = #tpu.dot_dimension_numbers<[1], [0], [0], [1], [0, 0, 1, 1], [], []>} : vector<2x32xf32>, vector<32x2xf32>, vector<2x2xf32> -> vector<2x2xf32>
    %cst_86 = arith.constant 0.000000e+00 : f32
    %97 = vector.broadcast %cst_86 : f32 to vector<2x2xf32>
    %98 = arith.maximumf %96, %97 : vector<2x2xf32>
    %c0_87 = arith.constant 0 : index
    %c0_88 = arith.constant 0 : index
    %99 = vector.load %arg8[%c0_87, %c0_88] : memref<2x32xf32, #tpu.memory_space<vmem>>, vector<2x32xf32>
    %cst_89 = arith.constant dense<0.000000e+00> : vector<2x32xf32>
    %100 = tpu.matmul %98, %99, %cst_89 {dimension_numbers = #tpu.dot_dimension_numbers<[1], [0], [0], [1], [0, 0, 1, 1], [], []>} : vector<2x2xf32>, vector<2x32xf32>, vector<2x32xf32> -> vector<2x32xf32>
    %101 = arith.negf %100 : vector<2x32xf32>
    %102 = math.exp %101 : vector<2x32xf32>
    %cst_90 = arith.constant 1.000000e+00 : f32
    %103 = vector.broadcast %cst_90 : f32 to vector<2x32xf32>
    %104 = arith.addf %103, %102 : vector<2x32xf32>
    %105 = arith.divf %103, %104 : vector<2x32xf32>
    %106 = vector.shape_cast %105 : vector<2x32xf32> to vector<2x1x32xf32>
    %107 = vector.broadcast %106 : vector<2x1x32xf32> to vector<2x16x32xf32>
    %108 = arith.mulf %91, %107 : vector<2x16x32xf32>
    %cst_91 = arith.constant 1.000000e-01 : f32
    %109 = vector.broadcast %cst_91 : f32 to vector<2x16x32xf32>
    %110 = arith.mulf %109, %108 : vector<2x16x32xf32>
    %111 = arith.addf %0, %110 : vector<2x16x32xf32>
    %c0_92 = arith.constant 0 : index
    %c0_93 = arith.constant 0 : index
    %c0_94 = arith.constant 0 : index
    %112 = vector.load %arg9[%c0_92, %c0_93, %c0_94] : memref<2x16x32xf32, #tpu.memory_space<vmem>>, vector<2x16x32xf32>
    tpu.vector_store %arg9[%c0_92, %c0_93, %c0_94], %111 {strides = array<i32>} : memref<2x16x32xf32, #tpu.memory_space<vmem>>, vector<2x16x32xf32>,
    return
  }
}

</mosaic_0001>

<llo_original>
// kernel: residual_block.1
$region0: #{residual_block.1}
  #allocation0 [shape = 'u32[]', space=smem, size = 0x4, offset = 0x4, fixed_abs, tag = 'smem constant byte address 0x4 - core index']
  #allocation1 [shape = 'u32[144,128]{1,0:T(1,128)}', space=vmem, size = 0x12000, scoped, tag = 'internal scratch']
  #allocation2 [shape = 'f32[2,32,32]{2,1,0:T(8,128)}', space=vmem, size = 0x8000, scoped, tag = 'scratch operand']
  %s0 = inlined_call_operand.vmem [shape: f32[2,16,32], index: 0, kind: input, shape index: {}, may-alias: {0,9}]
  %s1 = inlined_call_operand.vmem [shape: f32[5,32,32], index: 1, kind: input, shape index: {}]
  %s2 = inlined_call_operand.vmem [shape: f32[1,32], index: 2, kind: input, shape index: {}]
  %s3 = inlined_call_operand.vmem [shape: f32[1,32], index: 3, kind: input, shape index: {}]
  %s4 = inlined_call_operand.vmem [shape: f32[1,32], index: 4, kind: input, shape index: {}]
  %s5 = inlined_call_operand.vmem [shape: f32[3,32,32], index: 5, kind: input, shape index: {}]
  %s6 = inlined_call_operand.vmem [shape: f32[1,32], index: 6, kind: input, shape index: {}]
  %s7 = inlined_call_operand.vmem [shape: f32[32,2], index: 7, kind: input, shape index: {}]
  %s8 = inlined_call_operand.vmem [shape: f32[2,32], index: 8, kind: input, shape index: {}]
  %s9 = inlined_call_operand.vmem [shape: f32[2,16,32], index: 9, kind: output, shape index: {}, may-alias: {0,9}]
  %s10 = sld [smem:[#allocation0]]
  $region46: #{residual_block.1} parent=0
    _
  %s12 = ssub.s32 1, %s10
  %s13 = scalar_select 0, %s12, %s10
  // Predicated region
  $region2: #{residual_block.1} parent=0 // pred_check
    _
  $region3: #{residual_block.1} parent=0 // pred_check_branch
    %15 = sbr.rel (0) target = $region5
  $region4: #{residual_block.1} parent=0 // pred_region
    _
  $region5: #{residual_block.1} parent=0 // pred_fallthru
    _
  // Predicated region
  $region6: #{residual_block.1} parent=0 // pred_check
    _
  $region7: #{residual_block.1} parent=0 // pred_check_branch
    %17 = sbr.rel (0) target = $region9
  $region8: #{residual_block.1} parent=0 // pred_region
    _
  $region9: #{residual_block.1} parent=0 // pred_fallthru
    _
  // Predicated region
  $region10: #{residual_block.1} parent=0 // pred_check
    _
  $region11: #{residual_block.1} parent=0 // pred_check_branch
    %19 = sbr.rel (0) target = $region13
  $region12: #{residual_block.1} parent=0 // pred_region
    _
  $region13: #{residual_block.1} parent=0 // pred_fallthru
    _
  // Predicated region
  $region14: #{residual_block.1} parent=0 // pred_check
    _
  $region15: #{residual_block.1} parent=0 // pred_check_branch
    %21 = sbr.rel (0) target = $region17
  $region16: #{residual_block.1} parent=0 // pred_region
    _
  $region17: #{residual_block.1} parent=0 // pred_fallthru
    _
  // Predicated region
  $region18: #{residual_block.1} parent=0 // pred_check
    _
  $region19: #{residual_block.1} parent=0 // pred_check_branch
    %23 = sbr.rel (0) target = $region21
  $region20: #{residual_block.1} parent=0 // pred_region
    _
  $region21: #{residual_block.1} parent=0 // pred_fallthru
    _
  // Predicated region
  $region22: #{residual_block.1} parent=0 // pred_check
    _
  $region23: #{residual_block.1} parent=0 // pred_check_branch
    %25 = sbr.rel (0) target = $region25
  $region24: #{residual_block.1} parent=0 // pred_region
    _
  $region25: #{residual_block.1} parent=0 // pred_fallthru
    _
  // Predicated region
  $region26: #{residual_block.1} parent=0 // pred_check
    _
  $region27: #{residual_block.1} parent=0 // pred_check_branch
    %27 = sbr.rel (0) target = $region29
  $region28: #{residual_block.1} parent=0 // pred_region
    _
  $region29: #{residual_block.1} parent=0 // pred_fallthru
    _
  // Predicated region
  $region30: #{residual_block.1} parent=0 // pred_check
    _
  $region31: #{residual_block.1} parent=0 // pred_check_branch
    %29 = sbr.rel (0) target = $region33
  $region32: #{residual_block.1} parent=0 // pred_region
    _
  $region33: #{residual_block.1} parent=0 // pred_fallthru
    _
  // Predicated region
  $region34: #{residual_block.1} parent=0 // pred_check
    _
  $region35: #{residual_block.1} parent=0 // pred_check_branch
    %31 = sbr.rel (0) target = $region37
  $region36: #{residual_block.1} parent=0 // pred_region
    _
  $region37: #{residual_block.1} parent=0 // pred_fallthru
    _
  %v32 = vld [vmem:[%s0] sm:$0xff]
  %v33 = vld [vmem:[%s0 + $0x8] sm:$0xff]
  %v34 = vld [vmem:[%s0 + $0x10] sm:$0xff]
  %v35 = vld [vmem:[%s0 + $0x18] sm:$0xff]
  %vm36 = vcmask 254976
  %37 = vst.msk [vmem:[#allocation2 + $0x6] sm:$0x3] %vm36, 0.0
  %38 = vst.msk [vmem:[#allocation2 + $0x26] sm:$0x3] %vm36, 0.0
  %39 = vst.msk [vmem:[#allocation2 + $0x18] sm:$0x3] %vm36, 0.0
  %40 = vst.msk [vmem:[#allocation2 + $0x38] sm:$0x3] %vm36, 0.0
  %vm41 = vcmask 261120
  %42 = vst.msk [vmem:[#allocation2 + $0x8] sm:$0xff] %vm41, %v32
  %43 = vst.msk [vmem:[#allocation2 + $0x10] sm:$0xff] %vm41, %v33
  %44 = vst.msk [vmem:[#allocation2 + $0x28] sm:$0xff] %vm41, %v34
  %45 = vst.msk [vmem:[#allocation2 + $0x30] sm:$0xff] %vm41, %v35
  %v46 = vld [vmem:[%s2] sm:$0x1]
  %v47 = vld [vmem:[#allocation2 + $0x6] sm:$0xff]
  %v48 = vld [vmem:[#allocation2 + $0xe] sm:$0xff]
  %v49 = vld [vmem:[#allocation2 + $0x26] sm:$0xff]
  %v50 = vld [vmem:[#allocation2 + $0x2e] sm:$0xff]
  %v51 = vld [vmem:[%s1] sm:$0xff]
  %v52 = vld [vmem:[%s1 + $0x8] sm:$0xff]
  %v53 = vld [vmem:[%s1 + $0x10] sm:$0xff]
  %v54 = vld [vmem:[%s1 + $0x18] sm:$0xff]
  %v56 = vsel %vm41, %v47, 0
  %v59 = vsel %vm41, %v48, 0
  %v62 = vsel %vm41, %v49, 0
  %v65 = vsel %vm41, %v50, 0
  %67 = vmatprep.subr.mxu0 0.0
  %68 = vmatpush1.msra.mxu0 %v51
  %69 = vmatprep.subr.mxu0 0.0
  %70 = vmatpush1.msra.mxu0 %v52
  %71 = vmatprep.subr.mxu0 0.0
  %72 = vmatpush1.msra.mxu0 %v53
  %73 = vmatprep.subr.mxu0 0.0
  %74 = vmatpush1.msra.mxu0 %v54
  %75 = vmatprep.subr.mxu0 0.0
  %76 = vmatpush1.msra.mxu0 0.0
  %77 = vmatprep.subr.mxu0 0.0
  %78 = vmatpush1.msra.mxu0 0.0
  %79 = vmatprep.subr.mxu0 0.0
  %80 = vmatpush1.msra.mxu0 0.0
  %81 = vmatprep.subr.mxu0 0.0
  %82 = vmatpush1.msra.mxu0 0.0
  %83 = vmatprep.subr.mxu0 0.0
  %84 = vmatpush1.msra.mxu0 0.0
  %85 = vmatprep.subr.mxu0 0.0
  %86 = vmatpush1.msra.mxu0 0.0
  %87 = vmatprep.subr.mxu0 0.0
  %88 = vmatpush1.msra.mxu0 0.0
  %89 = vmatprep.subr.mxu0 0.0
  %90 = vmatpush1.msra.mxu0 0.0
  %91 = vmatprep.subr.mxu0 0.0
  %92 = vmatpush1.msra.mxu0 0.0
  %93 = vmatprep.subr.mxu0 0.0
  %94 = vmatpush1.msra.mxu0 0.0
  %95 = vmatprep.subr.mxu0 0.0
  %96 = vmatpush1.msra.mxu0 0.0
  %97 = vmatprep.subr.mxu0 0.0
  %98 = vmatpush1.msra.mxu0 0.0
  %99 = vmatprep.subr.mxu0 0.0
  %100 = vmatpush1.msra.mxu0 0.0
  %101 = vmatprep.subr.mxu0 0.0
  %102 = vmatpush1.msra.mxu0 0.0
  %103 = vmatprep.subr.mxu0 0.0
  %104 = vmatpush1.msra.mxu0 0.0
  %105 = vmatprep.subr.mxu0 0.0
  %106 = vmatpush1.msra.mxu0 0.0
  %107 = vmatprep.subr.mxu0 0.0
  %108 = vmatpush1.msra.mxu0 0.0
  %109 = vmatprep.subr.mxu0 0.0
  %110 = vmatpush1.msra.mxu0 0.0
  %111 = vmatprep.subr.mxu0 0.0
  %112 = vmatpush1.msra.mxu0 0.0
  %113 = vmatprep.subr.mxu0 0.0
  %114 = vmatpush1.msra.mxu0 0.0
  %115 = vmatprep.subr.mxu0 0.0
  %116 = vmatpush1.msra.mxu0 0.0
  %117 = vmatprep.subr.mxu0 0.0
  %118 = vmatpush1.msra.mxu0 0.0
  %119 = vmatprep.subr.mxu0 0.0
  %120 = vmatpush1.msra.mxu0 0.0
  %121 = vmatprep.subr.mxu0 0.0
  %122 = vmatpush1.msra.mxu0 0.0
  %123 = vmatprep.subr.mxu0 0.0
  %124 = vmatpush1.msra.mxu0 0.0
  %125 = vmatprep.subr.mxu0 0.0
  %126 = vmatpush1.msra.mxu0 0.0
  %127 = vmatprep.subr.mxu0 0.0
  %128 = vmatpush1.msra.mxu0 0.0
  %129 = vmatprep.subr.mxu0 0.0
  %130 = vmatpush1.msra.mxu0 0.0
  %131 = vmatprep.mubr.f32.mxu0 0.0
  %132 = vmatmul.mubr.f32.gmra.mrb[0].mxu0 %v56
  %v133 = vpop.f32.mrb[0].mxu0
  %v134 = vadd.f32 0.0, %v133
  %v135 = vpop.f32.mrb[0].mxu0
  %136 = vmatprep.mubr.f32.mxu0 0.0
  %137 = vmatmul.mubr.f32.gmra.mrb[0].mxu0 %v59
  %v138 = vpop.f32.mrb[0].mxu0
  %v139 = vadd.f32 0.0, %v138
  %v140 = vpop.f32.mrb[0].mxu0
  %141 = vmatprep.mubr.f32.mxu0 0.0
  %142 = vmatmul.mubr.f32.gmra.mrb[0].mxu0 %v62
  %v143 = vpop.f32.mrb[0].mxu0
  %v144 = vadd.f32 0.0, %v143
  %v145 = vpop.f32.mrb[0].mxu0
  %146 = vmatprep.mubr.f32.mxu0 0.0
  %147 = vmatmul.mubr.f32.gmra.mrb[0].mxu0 %v65
  %v148 = vpop.f32.mrb[0].mxu0
  %v149 = vadd.f32 0.0, %v148
  %v150 = vpop.f32.mrb[0].mxu0
  %151 = vdwg.mxu0
  %v153 = vlaneseq
  %v154 = vshrl.u32 %v153, 7
  %v155 = vsub.s32 0, %v154
  %v156 = vrot.slane %v46, %v155
  %v158 = vadd.f32 %v156, %v134
  %v159 = vadd.f32 %v156, %v139
  %v160 = vadd.f32 %v156, %v144
  %v161 = vadd.f32 %v156, %v149
  %v162 = vld [vmem:[#allocation2 + $0x7] sm:$0xff]
  %v163 = vld [vmem:[#allocation2 + $0xf] sm:$0xff]
  %v164 = vld [vmem:[#allocation2 + $0x27] sm:$0xff]
  %v165 = vld [vmem:[#allocation2 + $0x2f] sm:$0xff]
  %s166 = scalar_lea.vmem %s1, 32
  %v167 = vld [vmem:[%s166] sm:$0xff]
  %v168 = vld [vmem:[%s166 + $0x8] sm:$0xff]
  %v169 = vld [vmem:[%s166 + $0x10] sm:$0xff]
  %v170 = vld [vmem:[%s166 + $0x18] sm:$0xff]
  %v172 = vsel %vm41, %v162, 0
  %v175 = vsel %vm41, %v163, 0
  %v178 = vsel %vm41, %v164, 0
  %v181 = vsel %vm41, %v165, 0
  %183 = vmatprep.subr.mxu0 0.0
  %184 = vmatpush1.msra.mxu0 %v167
  %185 = vmatprep.subr.mxu0 0.0
  %186 = vmatpush1.msra.mxu0 %v168
  %187 = vmatprep.subr.mxu0 0.0
  %188 = vmatpush1.msra.mxu0 %v169
  %189 = vmatprep.subr.mxu0 0.0
  %190 = vmatpush1.msra.mxu0 %v170
  %191 = vmatprep.subr.mxu0 0.0
  %192 = vmatpush1.msra.mxu0 0.0
  %193 = vmatprep.subr.mxu0 0.0
  %194 = vmatpush1.msra.mxu0 0.0
  %195 = vmatprep.subr.mxu0 0.0
  %196 = vmatpush1.msra.mxu0 0.0
  %197 = vmatprep.subr.mxu0 0.0
  %198 = vmatpush1.msra.mxu0 0.0
  %199 = vmatprep.subr.mxu0 0.0
  %200 = vmatpush1.msra.mxu0 0.0
  %201 = vmatprep.subr.mxu0 0.0
  %202 = vmatpush1.msra.mxu0 0.0
  %203 = vmatprep.subr.mxu0 0.0
  %204 = vmatpush1.msra.mxu0 0.0
  %205 = vmatprep.subr.mxu0 0.0
  %206 = vmatpush1.msra.mxu0 0.0
  %207 = vmatprep.subr.mxu0 0.0
  %208 = vmatpush1.msra.mxu0 0.0
  %209 = vmatprep.subr.mxu0 0.0
  %210 = vmatpush1.msra.mxu0 0.0
  %211 = vmatprep.subr.mxu0 0.0
  %212 = vmatpush1.msra.mxu0 0.0
  %213 = vmatprep.subr.mxu0 0.0
  %214 = vmatpush1.msra.mxu0 0.0
  %215 = vmatprep.subr.mxu0 0.0
  %216 = vmatpush1.msra.mxu0 0.0
  %217 = vmatprep.subr.mxu0 0.0
  %218 = vmatpush1.msra.mxu0 0.0
  %219 = vmatprep.subr.mxu0 0.0
  %220 = vmatpush1.msra.mxu0 0.0
  %221 = vmatprep.subr.mxu0 0.0
  %222 = vmatpush1.msra.mxu0 0.0
  %223 = vmatprep.subr.mxu0 0.0
  %224 = vmatpush1.msra.mxu0 0.0
  %225 = vmatprep.subr.mxu0 0.0
  %226 = vmatpush1.msra.mxu0 0.0
  %227 = vmatprep.subr.mxu0 0.0
  %228 = vmatpush1.msra.mxu0 0.0
  %229 = vmatprep.subr.mxu0 0.0
  %230 = vmatpush1.msra.mxu0 0.0
  %231 = vmatprep.subr.mxu0 0.0
  %232 = vmatpush1.msra.mxu0 0.0
  %233 = vmatprep.subr.mxu0 0.0
  %234 = vmatpush1.msra.mxu0 0.0
  %235 = vmatprep.subr.mxu0 0.0
  %236 = vmatpush1.msra.mxu0 0.0
  %237 = vmatprep.subr.mxu0 0.0
  %238 = vmatpush1.msra.mxu0 0.0
  %239 = vmatprep.subr.mxu0 0.0
  %240 = vmatpush1.msra.mxu0 0.0
  %241 = vmatprep.subr.mxu0 0.0
  %242 = vmatpush1.msra.mxu0 0.0
  %243 = vmatprep.subr.mxu0 0.0
  %244 = vmatpush1.msra.mxu0 0.0
  %245 = vmatprep.subr.mxu0 0.0
  %246 = vmatpush1.msra.mxu0 0.0
  %247 = vmatprep.mubr.f32.mxu0 0.0
  %248 = vmatmul.mubr.f32.gmra.mrb[0].mxu0 %v172
  %v249 = vpop.f32.mrb[0].mxu0
  %v250 = vadd.f32 0.0, %v249
  %v251 = vpop.f32.mrb[0].mxu0
  %252 = vmatprep.mubr.f32.mxu0 0.0
  %253 = vmatmul.mubr.f32.gmra.mrb[0].mxu0 %v175
  %v254 = vpop.f32.mrb[0].mxu0
  %v255 = vadd.f32 0.0, %v254
  %v256 = vpop.f32.mrb[0].mxu0
  %257 = vmatprep.mubr.f32.mxu0 0.0
  %258 = vmatmul.mubr.f32.gmra.mrb[0].mxu0 %v178
  %v259 = vpop.f32.mrb[0].mxu0
  %v260 = vadd.f32 0.0, %v259
  %v261 = vpop.f32.mrb[0].mxu0
  %262 = vmatprep.mubr.f32.mxu0 0.0
  %263 = vmatmul.mubr.f32.gmra.mrb[0].mxu0 %v181
  %v264 = vpop.f32.mrb[0].mxu0
  %v265 = vadd.f32 0.0, %v264
  %v266 = vpop.f32.mrb[0].mxu0
  %267 = vdwg.mxu0
  %v268 = vadd.f32 %v158, %v250
  %v269 = vadd.f32 %v159, %v255
  %v270 = vadd.f32 %v160, %v260
  %v271 = vadd.f32 %v161, %v265
  %v272 = vld [vmem:[#allocation2 + $0x8] sm:$0xff]
  %v273 = vld [vmem:[#allocation2 + $0x10] sm:$0xff]
  %v274 = vld [vmem:[#allocation2 + $0x28] sm:$0xff]
  %v275 = vld [vmem:[#allocation2 + $0x30] sm:$0xff]
  %s276 = scalar_lea.vmem %s1, 64
  %v277 = vld [vmem:[%s276] sm:$0xff]
  %v278 = vld [vmem:[%s276 + $0x8] sm:$0xff]
  %v279 = vld [vmem:[%s276 + $0x10] sm:$0xff]
  %v280 = vld [vmem:[%s276 + $0x18] sm:$0xff]
  %v282 = vsel %vm41, %v272, 0
  %v285 = vsel %vm41, %v273, 0
  %v288 = vsel %vm41, %v274, 0
  %v291 = vsel %vm41, %v275, 0
  %293 = vmatprep.subr.mxu0 0.0
  %294 = vmatpush1.msra.mxu0 %v277
  %295 = vmatprep.subr.mxu0 0.0
  %296 = vmatpush1.msra.mxu0 %v278
  %297 = vmatprep.subr.mxu0 0.0
  %298 = vmatpush1.msra.mxu0 %v279
  %299 = vmatprep.subr.mxu0 0.0
  %300 = vmatpush1.msra.mxu0 %v280
  %301 = vmatprep.subr.mxu0 0.0
  %302 = vmatpush1.msra.mxu0 0.0
  %303 = vmatprep.subr.mxu0 0.0
  %304 = vmatpush1.msra.mxu0 0.0
  %305 = vmatprep.subr.mxu0 0.0
  %306 = vmatpush1.msra.mxu0 0.0
  %307 = vmatprep.subr.mxu0 0.0
  %308 = vmatpush1.msra.mxu0 0.0
  %309 = vmatprep.subr.mxu0 0.0
  %310 = vmatpush1.msra.mxu0 0.0
  %311 = vmatprep.subr.mxu0 0.0
  %312 = vmatpush1.msra.mxu0 0.0
  %313 = vmatprep.subr.mxu0 0.0
  %314 = vmatpush1.msra.mxu0 0.0
  %315 = vmatprep.subr.mxu0 0.0
  %316 = vmatpush1.msra.mxu0 0.0
  %317 = vmatprep.subr.mxu0 0.0
  %318 = vmatpush1.msra.mxu0 0.0
  %319 = vmatprep.subr.mxu0 0.0
  %320 = vmatpush1.msra.mxu0 0.0
  %321 = vmatprep.subr.mxu0 0.0
  %322 = vmatpush1.msra.mxu0 0.0
  %323 = vmatprep.subr.mxu0 0.0
  %324 = vmatpush1.msra.mxu0 0.0
  %325 = vmatprep.subr.mxu0 0.0
  %326 = vmatpush1.msra.mxu0 0.0
  %327 = vmatprep.subr.mxu0 0.0
  %328 = vmatpush1.msra.mxu0 0.0
  %329 = vmatprep.subr.mxu0 0.0
  %330 = vmatpush1.msra.mxu0 0.0
  %331 = vmatprep.subr.mxu0 0.0
  %332 = vmatpush1.msra.mxu0 0.0
  %333 = vmatprep.subr.mxu0 0.0
  %334 = vmatpush1.msra.mxu0 0.0
  %335 = vmatprep.subr.mxu0 0.0
  %336 = vmatpush1.msra.mxu0 0.0
  %337 = vmatprep.subr.mxu0 0.0
  %338 = vmatpush1.msra.mxu0 0.0
  %339 = vmatprep.subr.mxu0 0.0
  %340 = vmatpush1.msra.mxu0 0.0
  %341 = vmatprep.subr.mxu0 0.0
  %342 = vmatpush1.msra.mxu0 0.0
  %343 = vmatprep.subr.mxu0 0.0
  %344 = vmatpush1.msra.mxu0 0.0
  %345 = vmatprep.subr.mxu0 0.0
  %346 = vmatpush1.msra.mxu0 0.0
  %347 = vmatprep.subr.mxu0 0.0
  %348 = vmatpush1.msra.mxu0 0.0
  %349 = vmatprep.subr.mxu0 0.0
  %350 = vmatpush1.msra.mxu0 0.0
  %351 = vmatprep.subr.mxu0 0.0
  %352 = vmatpush1.msra.mxu0 0.0
  %353 = vmatprep.subr.mxu0 0.0
  %354 = vmatpush1.msra.mxu0 0.0
  %355 = vmatprep.subr.mxu0 0.0
  %356 = vmatpush1.msra.mxu0 0.0
  %357 = vmatprep.mubr.f32.mxu0 0.0
  %358 = vmatmul.mubr.f32.gmra.mrb[0].mxu0 %v282
  %v359 = vpop.f32.mrb[0].mxu0
  %v360 = vadd.f32 0.0, %v359
  %v361 = vpop.f32.mrb[0].mxu0
  %362 = vmatprep.mubr.f32.mxu0 0.0
  %363 = vmatmul.mubr.f32.gmra.mrb[0].mxu0 %v285
  %v364 = vpop.f32.mrb[0].mxu0
  %v365 = vadd.f32 0.0, %v364
  %v366 = vpop.f32.mrb[0].mxu0
  %367 = vmatprep.mubr.f32.mxu0 0.0
  %368 = vmatmul.mubr.f32.gmra.mrb[0].mxu0 %v288
  %v369 = vpop.f32.mrb[0].mxu0
  %v370 = vadd.f32 0.0, %v369
  %v371 = vpop.f32.mrb[0].mxu0
  %372 = vmatprep.mubr.f32.mxu0 0.0
  %373 = vmatmul.mubr.f32.gmra.mrb[0].mxu0 %v291
  %v374 = vpop.f32.mrb[0].mxu0
  %v375 = vadd.f32 0.0, %v374
  %v376 = vpop.f32.mrb[0].mxu0
  %377 = vdwg.mxu0
  %v378 = vadd.f32 %v268, %v360
  %v379 = vadd.f32 %v269, %v365
  %v380 = vadd.f32 %v270, %v370
  %v381 = vadd.f32 %v271, %v375
  %v382 = vld [vmem:[#allocation2 + $0x9] sm:$0xff]
  %v383 = vld [vmem:[#allocation2 + $0x11] sm:$0xff]
  %v384 = vld [vmem:[#allocation2 + $0x29] sm:$0xff]
  %v385 = vld [vmem:[#allocation2 + $0x31] sm:$0xff]
  %s386 = scalar_lea.vmem %s1, 96
  %v387 = vld [vmem:[%s386] sm:$0xff]
  %v388 = vld [vmem:[%s386 + $0x8] sm:$0xff]
  %v389 = vld [vmem:[%s386 + $0x10] sm:$0xff]
  %v390 = vld [vmem:[%s386 + $0x18] sm:$0xff]
  %v392 = vsel %vm41, %v382, 0
  %v395 = vsel %vm41, %v383, 0
  %v398 = vsel %vm41, %v384, 0
  %v401 = vsel %vm41, %v385, 0
  %403 = vmatprep.subr.mxu0 0.0
  %404 = vmatpush1.msra.mxu0 %v387
  %405 = vmatprep.subr.mxu0 0.0
  %406 = vmatpush1.msra.mxu0 %v388
  %407 = vmatprep.subr.mxu0 0.0
  %408 = vmatpush1.msra.mxu0 %v389
  %409 = vmatprep.subr.mxu0 0.0
  %410 = vmatpush1.msra.mxu0 %v390
  %411 = vmatprep.subr.mxu0 0.0
  %412 = vmatpush1.msra.mxu0 0.0
  %413 = vmatprep.subr.mxu0 0.0
  %414 = vmatpush1.msra.mxu0 0.0
  %415 = vmatprep.subr.mxu0 0.0
  %416 = vmatpush1.msra.mxu0 0.0
  %417 = vmatprep.subr.mxu0 0.0
  %418 = vmatpush1.msra.mxu0 0.0
  %419 = vmatprep.subr.mxu0 0.0
  %420 = vmatpush1.msra.mxu0 0.0
  %421 = vmatprep.subr.mxu0 0.0
  %422 = vmatpush1.msra.mxu0 0.0
  %423 = vmatprep.subr.mxu0 0.0
  %424 = vmatpush1.msra.mxu0 0.0
  %425 = vmatprep.subr.mxu0 0.0
  %426 = vmatpush1.msra.mxu0 0.0
  %427 = vmatprep.subr.mxu0 0.0
  %428 = vmatpush1.msra.mxu0 0.0
  %429 = vmatprep.subr.mxu0 0.0
  %430 = vmatpush1.msra.mxu0 0.0
  %431 = vmatprep.subr.mxu0 0.0
  %432 = vmatpush1.msra.mxu0 0.0
  %433 = vmatprep.subr.mxu0 0.0
  %434 = vmatpush1.msra.mxu0 0.0
  %435 = vmatprep.subr.mxu0 0.0
  %436 = vmatpush1.msra.mxu0 0.0
  %437 = vmatprep.subr.mxu0 0.0
  %438 = vmatpush1.msra.mxu0 0.0
  %439 = vmatprep.subr.mxu0 0.0
  %440 = vmatpush1.msra.mxu0 0.0
  %441 = vmatprep.subr.mxu0 0.0
  %442 = vmatpush1.msra.mxu0 0.0
  %443 = vmatprep.subr.mxu0 0.0
  %444 = vmatpush1.msra.mxu0 0.0
  %445 = vmatprep.subr.mxu0 0.0
  %446 = vmatpush1.msra.mxu0 0.0
  %447 = vmatprep.subr.mxu0 0.0
  %448 = vmatpush1.msra.mxu0 0.0
  %449 = vmatprep.subr.mxu0 0.0
  %450 = vmatpush1.msra.mxu0 0.0
  %451 = vmatprep.subr.mxu0 0.0
  %452 = vmatpush1.msra.mxu0 0.0
  %453 = vmatprep.subr.mxu0 0.0
  %454 = vmatpush1.msra.mxu0 0.0
  %455 = vmatprep.subr.mxu0 0.0
  %456 = vmatpush1.msra.mxu0 0.0
  %457 = vmatprep.subr.mxu0 0.0
  %458 = vmatpush1.msra.mxu0 0.0
  %459 = vmatprep.subr.mxu0 0.0
  %460 = vmatpush1.msra.mxu0 0.0
  %461 = vmatprep.subr.mxu0 0.0
  %462 = vmatpush1.msra.mxu0 0.0
  %463 = vmatprep.subr.mxu0 0.0
  %464 = vmatpush1.msra.mxu0 0.0
  %465 = vmatprep.subr.mxu0 0.0
  %466 = vmatpush1.msra.mxu0 0.0
  %467 = vmatprep.mubr.f32.mxu0 0.0
  %468 = vmatmul.mubr.f32.gmra.mrb[0].mxu0 %v392
  %v469 = vpop.f32.mrb[0].mxu0
  %v470 = vadd.f32 0.0, %v469
  %v471 = vpop.f32.mrb[0].mxu0
  %472 = vmatprep.mubr.f32.mxu0 0.0
  %473 = vmatmul.mubr.f32.gmra.mrb[0].mxu0 %v395
  %v474 = vpop.f32.mrb[0].mxu0
  %v475 = vadd.f32 0.0, %v474
  %v476 = vpop.f32.mrb[0].mxu0
  %477 = vmatprep.mubr.f32.mxu0 0.0
  %478 = vmatmul.mubr.f32.gmra.mrb[0].mxu0 %v398
  %v479 = vpop.f32.mrb[0].mxu0
  %v480 = vadd.f32 0.0, %v479
  %v481 = vpop.f32.mrb[0].mxu0
  %482 = vmatprep.mubr.f32.mxu0 0.0
  %483 = vmatmul.mubr.f32.gmra.mrb[0].mxu0 %v401
  %v484 = vpop.f32.mrb[0].mxu0
  %v485 = vadd.f32 0.0, %v484
  %v486 = vpop.f32.mrb[0].mxu0
  %487 = vdwg.mxu0
  %v488 = vadd.f32 %v378, %v470
  %v489 = vadd.f32 %v379, %v475
  %v490 = vadd.f32 %v380, %v480
  %v491 = vadd.f32 %v381, %v485
  %v492 = vld [vmem:[#allocation2 + $0xa] sm:$0xff]
  %v493 = vld [vmem:[#allocation2 + $0x12] sm:$0xff]
  %v494 = vld [vmem:[#allocation2 + $0x2a] sm:$0xff]
  %v495 = vld [vmem:[#allocation2 + $0x32] sm:$0xff]
  %s496 = scalar_lea.vmem %s1, 128
  %v497 = vld [vmem:[%s496] sm:$0xff]
  %v498 = vld [vmem:[%s496 + $0x8] sm:$0xff]
  %v499 = vld [vmem:[%s496 + $0x10] sm:$0xff]
  %v500 = vld [vmem:[%s496 + $0x18] sm:$0xff]
  %v502 = vsel %vm41, %v492, 0
  %v505 = vsel %vm41, %v493, 0
  %v508 = vsel %vm41, %v494, 0
  %v511 = vsel %vm41, %v495, 0
  %513 = vmatprep.subr.mxu0 0.0
  %514 = vmatpush1.msra.mxu0 %v497
  %515 = vmatprep.subr.mxu0 0.0
  %516 = vmatpush1.msra.mxu0 %v498
  %517 = vmatprep.subr.mxu0 0.0
  %518 = vmatpush1.msra.mxu0 %v499
  %519 = vmatprep.subr.mxu0 0.0
  %520 = vmatpush1.msra.mxu0 %v500
  %521 = vmatprep.subr.mxu0 0.0
  %522 = vmatpush1.msra.mxu0 0.0
  %523 = vmatprep.subr.mxu0 0.0
  %524 = vmatpush1.msra.mxu0 0.0
  %525 = vmatprep.subr.mxu0 0.0
  %526 = vmatpush1.msra.mxu0 0.0
  %527 = vmatprep.subr.mxu0 0.0
  %528 = vmatpush1.msra.mxu0 0.0
  %529 = vmatprep.subr.mxu0 0.0
  %530 = vmatpush1.msra.mxu0 0.0
  %531 = vmatprep.subr.mxu0 0.0
  %532 = vmatpush1.msra.mxu0 0.0
  %533 = vmatprep.subr.mxu0 0.0
  %534 = vmatpush1.msra.mxu0 0.0
  %535 = vmatprep.subr.mxu0 0.0
  %536 = vmatpush1.msra.mxu0 0.0
  %537 = vmatprep.subr.mxu0 0.0
  %538 = vmatpush1.msra.mxu0 0.0
  %539 = vmatprep.subr.mxu0 0.0
  %540 = vmatpush1.msra.mxu0 0.0
  %541 = vmatprep.subr.mxu0 0.0
  %542 = vmatpush1.msra.mxu0 0.0
  %543 = vmatprep.subr.mxu0 0.0
  %544 = vmatpush1.msra.mxu0 0.0
  %545 = vmatprep.subr.mxu0 0.0
  %546 = vmatpush1.msra.mxu0 0.0
  %547 = vmatprep.subr.mxu0 0.0
  %548 = vmatpush1.msra.mxu0 0.0
  %549 = vmatprep.subr.mxu0 0.0
  %550 = vmatpush1.msra.mxu0 0.0
  %551 = vmatprep.subr.mxu0 0.0
  %552 = vmatpush1.msra.mxu0 0.0
  %553 = vmatprep.subr.mxu0 0.0
  %554 = vmatpush1.msra.mxu0 0.0
  %555 = vmatprep.subr.mxu0 0.0
  %556 = vmatpush1.msra.mxu0 0.0
  %557 = vmatprep.subr.mxu0 0.0
  %558 = vmatpush1.msra.mxu0 0.0
  %559 = vmatprep.subr.mxu0 0.0
  %560 = vmatpush1.msra.mxu0 0.0
  %561 = vmatprep.subr.mxu0 0.0
  %562 = vmatpush1.msra.mxu0 0.0
  %563 = vmatprep.subr.mxu0 0.0
  %564 = vmatpush1.msra.mxu0 0.0
  %565 = vmatprep.subr.mxu0 0.0
  %566 = vmatpush1.msra.mxu0 0.0
  %567 = vmatprep.subr.mxu0 0.0
  %568 = vmatpush1.msra.mxu0 0.0
  %569 = vmatprep.subr.mxu0 0.0
  %570 = vmatpush1.msra.mxu0 0.0
  %571 = vmatprep.subr.mxu0 0.0
  %572 = vmatpush1.msra.mxu0 0.0
  %573 = vmatprep.subr.mxu0 0.0
  %574 = vmatpush1.msra.mxu0 0.0
  %575 = vmatprep.subr.mxu0 0.0
  %576 = vmatpush1.msra.mxu0 0.0
  %577 = vmatprep.mubr.f32.mxu0 0.0
  %578 = vmatmul.mubr.f32.gmra.mrb[0].mxu0 %v502
  %v579 = vpop.f32.mrb[0].mxu0
  %v580 = vadd.f32 0.0, %v579
  %v581 = vpop.f32.mrb[0].mxu0
  %582 = vmatprep.mubr.f32.mxu0 0.0
  %583 = vmatmul.mubr.f32.gmra.mrb[0].mxu0 %v505
  %v584 = vpop.f32.mrb[0].mxu0
  %v585 = vadd.f32 0.0, %v584
  %v586 = vpop.f32.mrb[0].mxu0
  %587 = vmatprep.mubr.f32.mxu0 0.0
  %588 = vmatmul.mubr.f32.gmra.mrb[0].mxu0 %v508
  %v589 = vpop.f32.mrb[0].mxu0
  %v590 = vadd.f32 0.0, %v589
  %v591 = vpop.f32.mrb[0].mxu0
  %592 = vmatprep.mubr.f32.mxu0 0.0
  %593 = vmatmul.mubr.f32.gmra.mrb[0].mxu0 %v511
  %v594 = vpop.f32.mrb[0].mxu0
  %v595 = vadd.f32 0.0, %v594
  %v596 = vpop.f32.mrb[0].mxu0
  %597 = vdwg.mxu0
  %v598 = vadd.f32 %v488, %v580
  %v599 = vadd.f32 %v489, %v585
  %v600 = vadd.f32 %v490, %v590
  %v601 = vadd.f32 %v491, %v595
  %v602 = vsel %vm41, %v598, 0.0
  %v603 = vsel %vm41, %v599, 0.0
  %v604 = vadd.f32 %v602, %v603
  %v605 = vsel %vm41, %v600, 0.0
  %v606 = vadd.f32 %v604, %v605
  %v607 = vsel %vm41, %v601, 0.0
  %v608 = vadd.f32 %v606, %v607
  %v609 = vrot.slane %v608, 4
  %v610 = vadd.f32 %v608, %v609
  %v611 = vrot.slane %v610, 2
  %v612 = vadd.f32 %v610, %v611
  %v613 = vrot.slane %v612, 1
  %v614 = vadd.f32 %v612, %v613
  %v615 = vrcp.pop 32.0
  %v616 = vmul.f32 %v614, %v615
  %v617 = vsub.f32 %v598, %v616
  %v618 = vsub.f32 %v599, %v616
  %v619 = vsub.f32 %v600, %v616
  %v620 = vsub.f32 %v601, %v616
  %v621 = vmul.f32 %v617, %v617
  %v622 = vmul.f32 %v618, %v618
  %v623 = vmul.f32 %v619, %v619
  %v624 = vmul.f32 %v620, %v620
  %v625 = vsel %vm41, %v621, 0.0
  %v626 = vsel %vm41, %v622, 0.0
  %v627 = vadd.f32 %v625, %v626
  %v628 = vsel %vm41, %v623, 0.0
  %v629 = vadd.f32 %v627, %v628
  %v630 = vsel %vm41, %v624, 0.0
  %v631 = vadd.f32 %v629, %v630
  %v632 = vrot.slane %v631, 4
  %v633 = vadd.f32 %v631, %v632
  %v634 = vrot.slane %v633, 2
  %v635 = vadd.f32 %v633, %v634
  %v636 = vrot.slane %v635, 1
  %v637 = vadd.f32 %v635, %v636
  %v638 = vmul.f32 %v637, %v615
  %v639 = vadd.f32 %v638, 1e-05
  %v640 = vrsqrt.pop %v639
  %v641 = vld [vmem:[%s3] sm:$0x1]
  %v642 = vmul.f32 %v640, %v641
  %v643 = vld [vmem:[%s4] sm:$0x1]
  %v644 = vmul.f32 %v616, %v642
  %v645 = vsub.f32 %v643, %v644
  %v646 = vlaneseq
  %v647 = vshrl.u32 %v646, 7
  %v648 = vsub.s32 0, %v647
  %v649 = vrot.slane %v642, %v648
  %v650 = vmul.f32 %v598, %v649
  %v651 = vmul.f32 %v599, %v649
  %v652 = vmul.f32 %v600, %v649
  %v653 = vmul.f32 %v601, %v649
  %v655 = vlaneseq
  %v656 = vshrl.u32 %v655, 7
  %v657 = vsub.s32 0, %v656
  %v658 = vrot.slane %v645, %v657
  %v660 = vadd.f32 %v650, %v658
  %v661 = vadd.f32 %v651, %v658
  %v662 = vadd.f32 %v652, %v658
  %v663 = vadd.f32 %v653, %v658
  %v664 = vxor.u32 %v660, 2147483648
  %v665 = vxor.u32 %v661, 2147483648
  %v666 = vxor.u32 %v662, 2147483648
  %v667 = vxor.u32 %v663, 2147483648
  %v668 = vmul.f32 %v664, 1.442695
  %v669 = vpow.pop %v668
  %v670 = vmul.f32 %v665, 1.442695
  %v671 = vpow.pop %v670
  %v672 = vmul.f32 %v666, 1.442695
  %v673 = vpow.pop %v672
  %v674 = vmul.f32 %v667, 1.442695
  %v675 = vpow.pop %v674
  %v676 = vadd.f32 %v669, 1.0
  %v677 = vadd.f32 %v671, 1.0
  %v678 = vadd.f32 %v673, 1.0
  %v679 = vadd.f32 %v675, 1.0
  %v680 = vrcp.pop %v676
  %v681 = vmul.f32 1.0, %v680
  %v682 = vrcp.pop %v677
  %v683 = vmul.f32 1.0, %v682
  %v684 = vrcp.pop %v678
  %v685 = vmul.f32 1.0, %v684
  %v686 = vrcp.pop %v679
  %v687 = vmul.f32 1.0, %v686
  %v688 = vmul.f32 %v660, %v681
  %v689 = vmul.f32 %v661, %v683
  %v690 = vmul.f32 %v662, %v685
  %v691 = vmul.f32 %v663, %v687
  %vm692 = vcmask 253952
  %693 = vst.msk [vmem:[#allocation2 + $0x7] sm:$0x1] %vm692, 0.0
  %694 = vst.msk [vmem:[#allocation2 + $0x27] sm:$0x1] %vm692, 0.0
  %695 = vst.msk [vmem:[#allocation2 + $0x18] sm:$0x1] %vm692, 0.0
  %696 = vst.msk [vmem:[#allocation2 + $0x38] sm:$0x1] %vm692, 0.0
  %697 = vst.msk [vmem:[#allocation2 + $0x8] sm:$0xff] %vm41, %v688
  %698 = vst.msk [vmem:[#allocation2 + $0x10] sm:$0xff] %vm41, %v689
  %699 = vst.msk [vmem:[#allocation2 + $0x28] sm:$0xff] %vm41, %v690
  %700 = vst.msk [vmem:[#allocation2 + $0x30] sm:$0xff] %vm41, %v691
  %v701 = vld [vmem:[%s6] sm:$0x1]
  %v702 = vld [vmem:[#allocation2 + $0x7] sm:$0xff]
  %v703 = vld [vmem:[#allocation2 + $0xf] sm:$0xff]
  %v704 = vld [vmem:[#allocation2 + $0x27] sm:$0xff]
  %v705 = vld [vmem:[#allocation2 + $0x2f] sm:$0xff]
  %v706 = vld [vmem:[%s5] sm:$0xff]
  %v707 = vld [vmem:[%s5 + $0x8] sm:$0xff]
  %v708 = vld [vmem:[%s5 + $0x10] sm:$0xff]
  %v709 = vld [vmem:[%s5 + $0x18] sm:$0xff]
  %v711 = vsel %vm41, %v702, 0
  %v714 = vsel %vm41, %v703, 0
  %v717 = vsel %vm41, %v704, 0
  %v720 = vsel %vm41, %v705, 0
  %722 = vmatprep.subr.mxu0 0.0
  %723 = vmatpush1.msra.mxu0 %v706
  %724 = vmatprep.subr.mxu0 0.0
  %725 = vmatpush1.msra.mxu0 %v707
  %726 = vmatprep.subr.mxu0 0.0
  %727 = vmatpush1.msra.mxu0 %v708
  %728 = vmatprep.subr.mxu0 0.0
  %729 = vmatpush1.msra.mxu0 %v709
  %730 = vmatprep.subr.mxu0 0.0
  %731 = vmatpush1.msra.mxu0 0.0
  %732 = vmatprep.subr.mxu0 0.0
  %733 = vmatpush1.msra.mxu0 0.0
  %734 = vmatprep.subr.mxu0 0.0
  %735 = vmatpush1.msra.mxu0 0.0
  %736 = vmatprep.subr.mxu0 0.0
  %737 = vmatpush1.msra.mxu0 0.0
  %738 = vmatprep.subr.mxu0 0.0
  %739 = vmatpush1.msra.mxu0 0.0
  %740 = vmatprep.subr.mxu0 0.0
  %741 = vmatpush1.msra.mxu0 0.0
  %742 = vmatprep.subr.mxu0 0.0
  %743 = vmatpush1.msra.mxu0 0.0
  %744 = vmatprep.subr.mxu0 0.0
  %745 = vmatpush1.msra.mxu0 0.0
  %746 = vmatprep.subr.mxu0 0.0
  %747 = vmatpush1.msra.mxu0 0.0
  %748 = vmatprep.subr.mxu0 0.0
  %749 = vmatpush1.msra.mxu0 0.0
  %750 = vmatprep.subr.mxu0 0.0
  %751 = vmatpush1.msra.mxu0 0.0
  %752 = vmatprep.subr.mxu0 0.0
  %753 = vmatpush1.msra.mxu0 0.0
  %754 = vmatprep.subr.mxu0 0.0
  %755 = vmatpush1.msra.mxu0 0.0
  %756 = vmatprep.subr.mxu0 0.0
  %757 = vmatpush1.msra.mxu0 0.0
  %758 = vmatprep.subr.mxu0 0.0
  %759 = vmatpush1.msra.mxu0 0.0
  %760 = vmatprep.subr.mxu0 0.0
  %761 = vmatpush1.msra.mxu0 0.0
  %762 = vmatprep.subr.mxu0 0.0
  %763 = vmatpush1.msra.mxu0 0.0
  %764 = vmatprep.subr.mxu0 0.0
  %765 = vmatpush1.msra.mxu0 0.0
  %766 = vmatprep.subr.mxu0 0.0
  %767 = vmatpush1.msra.mxu0 0.0
  %768 = vmatprep.subr.mxu0 0.0
  %769 = vmatpush1.msra.mxu0 0.0
  %770 = vmatprep.subr.mxu0 0.0
  %771 = vmatpush1.msra.mxu0 0.0
  %772 = vmatprep.subr.mxu0 0.0
  %773 = vmatpush1.msra.mxu0 0.0
  %774 = vmatprep.subr.mxu0 0.0
  %775 = vmatpush1.msra.mxu0 0.0
  %776 = vmatprep.subr.mxu0 0.0
  %777 = vmatpush1.msra.mxu0 0.0
  %778 = vmatprep.subr.mxu0 0.0
  %779 = vmatpush1.msra.mxu0 0.0
  %780 = vmatprep.subr.mxu0 0.0
  %781 = vmatpush1.msra.mxu0 0.0
  %782 = vmatprep.subr.mxu0 0.0
  %783 = vmatpush1.msra.mxu0 0.0
  %784 = vmatprep.subr.mxu0 0.0
  %785 = vmatpush1.msra.mxu0 0.0
  %786 = vmatprep.mubr.f32.mxu0 0.0
  %787 = vmatmul.mubr.f32.gmra.mrb[0].mxu0 %v711
  %v788 = vpop.f32.mrb[0].mxu0
  %v789 = vadd.f32 0.0, %v788
  %v790 = vpop.f32.mrb[0].mxu0
  %791 = vmatprep.mubr.f32.mxu0 0.0
  %792 = vmatmul.mubr.f32.gmra.mrb[0].mxu0 %v714
  %v793 = vpop.f32.mrb[0].mxu0
  %v794 = vadd.f32 0.0, %v793
  %v795 = vpop.f32.mrb[0].mxu0
  %796 = vmatprep.mubr.f32.mxu0 0.0
  %797 = vmatmul.mubr.f32.gmra.mrb[0].mxu0 %v717
  %v798 = vpop.f32.mrb[0].mxu0
  %v799 = vadd.f32 0.0, %v798
  %v800 = vpop.f32.mrb[0].mxu0
  %801 = vmatprep.mubr.f32.mxu0 0.0
  %802 = vmatmul.mubr.f32.gmra.mrb[0].mxu0 %v720
  %v803 = vpop.f32.mrb[0].mxu0
  %v804 = vadd.f32 0.0, %v803
  %v805 = vpop.f32.mrb[0].mxu0
  %806 = vdwg.mxu0
  %v808 = vlaneseq
  %v809 = vshrl.u32 %v808, 7
  %v810 = vsub.s32 0, %v809
  %v811 = vrot.slane %v701, %v810
  %v813 = vadd.f32 %v811, %v789
  %v814 = vadd.f32 %v811, %v794
  %v815 = vadd.f32 %v811, %v799
  %v816 = vadd.f32 %v811, %v804
  %v817 = vld [vmem:[#allocation2 + $0x8] sm:$0xff]
  %v818 = vld [vmem:[#allocation2 + $0x10] sm:$0xff]
  %v819 = vld [vmem:[#allocation2 + $0x28] sm:$0xff]
  %v820 = vld [vmem:[#allocation2 + $0x30] sm:$0xff]
  %s821 = scalar_lea.vmem %s5, 32
  %v822 = vld [vmem:[%s821] sm:$0xff]
  %v823 = vld [vmem:[%s821 + $0x8] sm:$0xff]
  %v824 = vld [vmem:[%s821 + $0x10] sm:$0xff]
  %v825 = vld [vmem:[%s821 + $0x18] sm:$0xff]
  %v827 = vsel %vm41, %v817, 0
  %v830 = vsel %vm41, %v818, 0
  %v833 = vsel %vm41, %v819, 0
  %v836 = vsel %vm41, %v820, 0
  %838 = vmatprep.subr.mxu0 0.0
  %839 = vmatpush1.msra.mxu0 %v822
  %840 = vmatprep.subr.mxu0 0.0
  %841 = vmatpush1.msra.mxu0 %v823
  %842 = vmatprep.subr.mxu0 0.0
  %843 = vmatpush1.msra.mxu0 %v824
  %844 = vmatprep.subr.mxu0 0.0
  %845 = vmatpush1.msra.mxu0 %v825
  %846 = vmatprep.subr.mxu0 0.0
  %847 = vmatpush1.msra.mxu0 0.0
  %848 = vmatprep.subr.mxu0 0.0
  %849 = vmatpush1.msra.mxu0 0.0
  %850 = vmatprep.subr.mxu0 0.0
  %851 = vmatpush1.msra.mxu0 0.0
  %852 = vmatprep.subr.mxu0 0.0
  %853 = vmatpush1.msra.mxu0 0.0
  %854 = vmatprep.subr.mxu0 0.0
  %855 = vmatpush1.msra.mxu0 0.0
  %856 = vmatprep.subr.mxu0 0.0
  %857 = vmatpush1.msra.mxu0 0.0
  %858 = vmatprep.subr.mxu0 0.0
  %859 = vmatpush1.msra.mxu0 0.0
  %860 = vmatprep.subr.mxu0 0.0
  %861 = vmatpush1.msra.mxu0 0.0
  %862 = vmatprep.subr.mxu0 0.0
  %863 = vmatpush1.msra.mxu0 0.0
  %864 = vmatprep.subr.mxu0 0.0
  %865 = vmatpush1.msra.mxu0 0.0
  %866 = vmatprep.subr.mxu0 0.0
  %867 = vmatpush1.msra.mxu0 0.0
  %868 = vmatprep.subr.mxu0 0.0
  %869 = vmatpush1.msra.mxu0 0.0
  %870 = vmatprep.subr.mxu0 0.0
  %871 = vmatpush1.msra.mxu0 0.0
  %872 = vmatprep.subr.mxu0 0.0
  %873 = vmatpush1.msra.mxu0 0.0
  %874 = vmatprep.subr.mxu0 0.0
  %875 = vmatpush1.msra.mxu0 0.0
  %876 = vmatprep.subr.mxu0 0.0
  %877 = vmatpush1.msra.mxu0 0.0
  %878 = vmatprep.subr.mxu0 0.0
  %879 = vmatpush1.msra.mxu0 0.0
  %880 = vmatprep.subr.mxu0 0.0
  %881 = vmatpush1.msra.mxu0 0.0
  %882 = vmatprep.subr.mxu0 0.0
  %883 = vmatpush1.msra.mxu0 0.0
  %884 = vmatprep.subr.mxu0 0.0
  %885 = vmatpush1.msra.mxu0 0.0
  %886 = vmatprep.subr.mxu0 0.0
  %887 = vmatpush1.msra.mxu0 0.0
  %888 = vmatprep.subr.mxu0 0.0
  %889 = vmatpush1.msra.mxu0 0.0
  %890 = vmatprep.subr.mxu0 0.0
  %891 = vmatpush1.msra.mxu0 0.0
  %892 = vmatprep.subr.mxu0 0.0
  %893 = vmatpush1.msra.mxu0 0.0
  %894 = vmatprep.subr.mxu0 0.0
  %895 = vmatpush1.msra.mxu0 0.0
  %896 = vmatprep.subr.mxu0 0.0
  %897 = vmatpush1.msra.mxu0 0.0
  %898 = vmatprep.subr.mxu0 0.0
  %899 = vmatpush1.msra.mxu0 0.0
  %900 = vmatprep.subr.mxu0 0.0
  %901 = vmatpush1.msra.mxu0 0.0
  %902 = vmatprep.mubr.f32.mxu0 0.0
  %903 = vmatmul.mubr.f32.gmra.mrb[0].mxu0 %v827
  %v904 = vpop.f32.mrb[0].mxu0
  %v905 = vadd.f32 0.0, %v904
  %v906 = vpop.f32.mrb[0].mxu0
  %907 = vmatprep.mubr.f32.mxu0 0.0
  %908 = vmatmul.mubr.f32.gmra.mrb[0].mxu0 %v830
  %v909 = vpop.f32.mrb[0].mxu0
  %v910 = vadd.f32 0.0, %v909
  %v911 = vpop.f32.mrb[0].mxu0
  %912 = vmatprep.mubr.f32.mxu0 0.0
  %913 = vmatmul.mubr.f32.gmra.mrb[0].mxu0 %v833
  %v914 = vpop.f32.mrb[0].mxu0
  %v915 = vadd.f32 0.0, %v914
  %v916 = vpop.f32.mrb[0].mxu0
  %917 = vmatprep.mubr.f32.mxu0 0.0
  %918 = vmatmul.mubr.f32.gmra.mrb[0].mxu0 %v836
  %v919 = vpop.f32.mrb[0].mxu0
  %v920 = vadd.f32 0.0, %v919
  %v921 = vpop.f32.mrb[0].mxu0
  %922 = vdwg.mxu0
  %v923 = vadd.f32 %v813, %v905
  %v924 = vadd.f32 %v814, %v910
  %v925 = vadd.f32 %v815, %v915
  %v926 = vadd.f32 %v816, %v920
  %v927 = vld [vmem:[#allocation2 + $0x9] sm:$0xff]
  %v928 = vld [vmem:[#allocation2 + $0x11] sm:$0xff]
  %v929 = vld [vmem:[#allocation2 + $0x29] sm:$0xff]
  %v930 = vld [vmem:[#allocation2 + $0x31] sm:$0xff]
  %s931 = scalar_lea.vmem %s5, 64
  %v932 = vld [vmem:[%s931] sm:$0xff]
  %v933 = vld [vmem:[%s931 + $0x8] sm:$0xff]
  %v934 = vld [vmem:[%s931 + $0x10] sm:$0xff]
  %v935 = vld [vmem:[%s931 + $0x18] sm:$0xff]
  %v937 = vsel %vm41, %v927, 0
  %v940 = vsel %vm41, %v928, 0
  %v943 = vsel %vm41, %v929, 0
  %v946 = vsel %vm41, %v930, 0
  %948 = vmatprep.subr.mxu0 0.0
  %949 = vmatpush1.msra.mxu0 %v932
  %950 = vmatprep.subr.mxu0 0.0
  %951 = vmatpush1.msra.mxu0 %v933
  %952 = vmatprep.subr.mxu0 0.0
  %953 = vmatpush1.msra.mxu0 %v934
  %954 = vmatprep.subr.mxu0 0.0
  %955 = vmatpush1.msra.mxu0 %v935
  %956 = vmatprep.subr.mxu0 0.0
  %957 = vmatpush1.msra.mxu0 0.0
  %958 = vmatprep.subr.mxu0 0.0
  %959 = vmatpush1.msra.mxu0 0.0
  %960 = vmatprep.subr.mxu0 0.0
  %961 = vmatpush1.msra.mxu0 0.0
  %962 = vmatprep.subr.mxu0 0.0
  %963 = vmatpush1.msra.mxu0 0.0
  %964 = vmatprep.subr.mxu0 0.0
  %965 = vmatpush1.msra.mxu0 0.0
  %966 = vmatprep.subr.mxu0 0.0
  %967 = vmatpush1.msra.mxu0 0.0
  %968 = vmatprep.subr.mxu0 0.0
  %969 = vmatpush1.msra.mxu0 0.0
  %970 = vmatprep.subr.mxu0 0.0
  %971 = vmatpush1.msra.mxu0 0.0
  %972 = vmatprep.subr.mxu0 0.0
  %973 = vmatpush1.msra.mxu0 0.0
  %974 = vmatprep.subr.mxu0 0.0
  %975 = vmatpush1.msra.mxu0 0.0
  %976 = vmatprep.subr.mxu0 0.0
  %977 = vmatpush1.msra.mxu0 0.0
  %978 = vmatprep.subr.mxu0 0.0
  %979 = vmatpush1.msra.mxu0 0.0
  %980 = vmatprep.subr.mxu0 0.0
  %981 = vmatpush1.msra.mxu0 0.0
  %982 = vmatprep.subr.mxu0 0.0
  %983 = vmatpush1.msra.mxu0 0.0
  %984 = vmatprep.subr.mxu0 0.0
  %985 = vmatpush1.msra.mxu0 0.0
  %986 = vmatprep.subr.mxu0 0.0
  %987 = vmatpush1.msra.mxu0 0.0
  %988 = vmatprep.subr.mxu0 0.0
  %989 = vmatpush1.msra.mxu0 0.0
  %990 = vmatprep.subr.mxu0 0.0
  %991 = vmatpush1.msra.mxu0 0.0
  %992 = vmatprep.subr.mxu0 0.0
  %993 = vmatpush1.msra.mxu0 0.0
  %994 = vmatprep.subr.mxu0 0.0
  %995 = vmatpush1.msra.mxu0 0.0
  %996 = vmatprep.subr.mxu0 0.0
  %997 = vmatpush1.msra.mxu0 0.0
  %998 = vmatprep.subr.mxu0 0.0
  %999 = vmatpush1.msra.mxu0 0.0
  %1000 = vmatprep.subr.mxu0 0.0
  %1001 = vmatpush1.msra.mxu0 0.0
  %1002 = vmatprep.subr.mxu0 0.0
  %1003 = vmatpush1.msra.mxu0 0.0
  %1004 = vmatprep.subr.mxu0 0.0
  %1005 = vmatpush1.msra.mxu0 0.0
  %1006 = vmatprep.subr.mxu0 0.0
  %1007 = vmatpush1.msra.mxu0 0.0
  %1008 = vmatprep.subr.mxu0 0.0
  %1009 = vmatpush1.msra.mxu0 0.0
  %1010 = vmatprep.subr.mxu0 0.0
  %1011 = vmatpush1.msra.mxu0 0.0
  %1012 = vmatprep.mubr.f32.mxu0 0.0
  %1013 = vmatmul.mubr.f32.gmra.mrb[0].mxu0 %v937
  %v1014 = vpop.f32.mrb[0].mxu0
  %v1015 = vadd.f32 0.0, %v1014
  %v1016 = vpop.f32.mrb[0].mxu0
  %1017 = vmatprep.mubr.f32.mxu0 0.0
  %1018 = vmatmul.mubr.f32.gmra.mrb[0].mxu0 %v940
  %v1019 = vpop.f32.mrb[0].mxu0
  %v1020 = vadd.f32 0.0, %v1019
  %v1021 = vpop.f32.mrb[0].mxu0
  %1022 = vmatprep.mubr.f32.mxu0 0.0
  %1023 = vmatmul.mubr.f32.gmra.mrb[0].mxu0 %v943
  %v1024 = vpop.f32.mrb[0].mxu0
  %v1025 = vadd.f32 0.0, %v1024
  %v1026 = vpop.f32.mrb[0].mxu0
  %1027 = vmatprep.mubr.f32.mxu0 0.0
  %1028 = vmatmul.mubr.f32.gmra.mrb[0].mxu0 %v946
  %v1029 = vpop.f32.mrb[0].mxu0
  %v1030 = vadd.f32 0.0, %v1029
  %v1031 = vpop.f32.mrb[0].mxu0
  %1032 = vdwg.mxu0
  %v1033 = vadd.f32 %v923, %v1015
  %v1034 = vadd.f32 %v924, %v1020
  %v1035 = vadd.f32 %v925, %v1025
  %v1036 = vadd.f32 %v926, %v1030
  %v1037 = vsel %vm41, %v1033, 0.0
  %v1038 = vsel %vm41, %v1034, 0.0
  %v1039 = vadd.f32 %v1037, %v1038
  %v1040 = vrot.slane %v1039, 4
  %v1041 = vadd.f32 %v1039, %v1040
  %v1042 = vrot.slane %v1041, 2
  %v1043 = vadd.f32 %v1041, %v1042
  %v1044 = vrot.slane %v1043, 1
  %v1045 = vadd.f32 %v1043, %v1044
  %v1046 = vsel %vm41, %v1035, 0.0
  %v1047 = vsel %vm41, %v1036, 0.0
  %v1048 = vadd.f32 %v1046, %v1047
  %v1049 = vrot.slane %v1048, 4
  %v1050 = vadd.f32 %v1048, %v1049
  %v1051 = vrot.slane %v1050, 2
  %v1052 = vadd.f32 %v1050, %v1051
  %v1053 = vrot.slane %v1052, 1
  %v1054 = vadd.f32 %v1052, %v1053
  %v1055 = vrcp.pop 16.0
  %v1056 = vmul.f32 %v1045, %v1055
  %v1057 = vmul.f32 %v1054, %v1055
  %v1058 = vld [vmem:[%s7] sm:$0xff]
  %v1059 = vld [vmem:[%s7 + $0x8] sm:$0xff]
  %v1060 = vld [vmem:[%s7 + $0x10] sm:$0xff]
  %v1061 = vld [vmem:[%s7 + $0x18] sm:$0xff]
  %vm1064 = vcmask 1041409
  %v1065 = vsel %vm1064, %v1057, %v1056
  %v1066 = vsel %vm41, %v1065, 0
  %1068 = vmatprep.subr.mxu0 0.0
  %1069 = vmatpush1.msra.mxu0 %v1058
  %1070 = vmatprep.subr.mxu0 0.0
  %1071 = vmatpush1.msra.mxu0 %v1059
  %1072 = vmatprep.subr.mxu0 0.0
  %1073 = vmatpush1.msra.mxu0 %v1060
  %1074 = vmatprep.subr.mxu0 0.0
  %1075 = vmatpush1.msra.mxu0 %v1061
  %1076 = vmatprep.subr.mxu0 0.0
  %1077 = vmatpush1.msra.mxu0 0.0
  %1078 = vmatprep.subr.mxu0 0.0
  %1079 = vmatpush1.msra.mxu0 0.0
  %1080 = vmatprep.subr.mxu0 0.0
  %1081 = vmatpush1.msra.mxu0 0.0
  %1082 = vmatprep.subr.mxu0 0.0
  %1083 = vmatpush1.msra.mxu0 0.0
  %1084 = vmatprep.subr.mxu0 0.0
  %1085 = vmatpush1.msra.mxu0 0.0
  %1086 = vmatprep.subr.mxu0 0.0
  %1087 = vmatpush1.msra.mxu0 0.0
  %1088 = vmatprep.subr.mxu0 0.0
  %1089 = vmatpush1.msra.mxu0 0.0
  %1090 = vmatprep.subr.mxu0 0.0
  %1091 = vmatpush1.msra.mxu0 0.0
  %1092 = vmatprep.subr.mxu0 0.0
  %1093 = vmatpush1.msra.mxu0 0.0
  %1094 = vmatprep.subr.mxu0 0.0
  %1095 = vmatpush1.msra.mxu0 0.0
  %1096 = vmatprep.subr.mxu0 0.0
  %1097 = vmatpush1.msra.mxu0 0.0
  %1098 = vmatprep.subr.mxu0 0.0
  %1099 = vmatpush1.msra.mxu0 0.0
  %1100 = vmatprep.subr.mxu0 0.0
  %1101 = vmatpush1.msra.mxu0 0.0
  %1102 = vmatprep.subr.mxu0 0.0
  %1103 = vmatpush1.msra.mxu0 0.0
  %1104 = vmatprep.subr.mxu0 0.0
  %1105 = vmatpush1.msra.mxu0 0.0
  %1106 = vmatprep.subr.mxu0 0.0
  %1107 = vmatpush1.msra.mxu0 0.0
  %1108 = vmatprep.subr.mxu0 0.0
  %1109 = vmatpush1.msra.mxu0 0.0
  %1110 = vmatprep.subr.mxu0 0.0
  %1111 = vmatpush1.msra.mxu0 0.0
  %1112 = vmatprep.subr.mxu0 0.0
  %1113 = vmatpush1.msra.mxu0 0.0
  %1114 = vmatprep.subr.mxu0 0.0
  %1115 = vmatpush1.msra.mxu0 0.0
  %1116 = vmatprep.subr.mxu0 0.0
  %1117 = vmatpush1.msra.mxu0 0.0
  %1118 = vmatprep.subr.mxu0 0.0
  %1119 = vmatpush1.msra.mxu0 0.0
  %1120 = vmatprep.subr.mxu0 0.0
  %1121 = vmatpush1.msra.mxu0 0.0
  %1122 = vmatprep.subr.mxu0 0.0
  %1123 = vmatpush1.msra.mxu0 0.0
  %1124 = vmatprep.subr.mxu0 0.0
  %1125 = vmatpush1.msra.mxu0 0.0
  %1126 = vmatprep.subr.mxu0 0.0
  %1127 = vmatpush1.msra.mxu0 0.0
  %1128 = vmatprep.subr.mxu0 0.0
  %1129 = vmatpush1.msra.mxu0 0.0
  %1130 = vmatprep.subr.mxu0 0.0
  %1131 = vmatpush1.msra.mxu0 0.0
  %1132 = vmatprep.mubr.f32.mxu0 0.0
  %1133 = vmatmul.mubr.f32.gmra.mrb[0].mxu0 %v1066
  %v1134 = vpop.f32.mrb[0].mxu0
  %v1135 = vadd.f32 0.0, %v1134
  %v1136 = vpop.f32.mrb[0].mxu0
  %1137 = vdwg.mxu0
  %v1138 = vmax.f32 %v1135, 0.0
  %v1139 = vld [vmem:[%s8] sm:$0x3]
  %vm1140 = vcmask 15360
  %v1142 = vsel %vm1140, %v1138, 0
  %vm1144 = vcmask 1041408
  %v1146 = vsel %vm1144, %v1139, 0
  %1148 = vmatprep.subr.mxu0 0.0
  %1149 = vmatpush1.msra.mxu0 %v1146
  %1150 = vmatprep.subr.mxu0 0.0
  %1151 = vmatpush1.msra.mxu0 0.0
  %1152 = vmatprep.subr.mxu0 0.0
  %1153 = vmatpush1.msra.mxu0 0.0
  %1154 = vmatprep.subr.mxu0 0.0
  %1155 = vmatpush1.msra.mxu0 0.0
  %1156 = vmatprep.subr.mxu0 0.0
  %1157 = vmatpush1.msra.mxu0 0.0
  %1158 = vmatprep.subr.mxu0 0.0
  %1159 = vmatpush1.msra.mxu0 0.0
  %1160 = vmatprep.subr.mxu0 0.0
  %1161 = vmatpush1.msra.mxu0 0.0
  %1162 = vmatprep.subr.mxu0 0.0
  %1163 = vmatpush1.msra.mxu0 0.0
  %1164 = vmatprep.subr.mxu0 0.0
  %1165 = vmatpush1.msra.mxu0 0.0
  %1166 = vmatprep.subr.mxu0 0.0
  %1167 = vmatpush1.msra.mxu0 0.0
  %1168 = vmatprep.subr.mxu0 0.0
  %1169 = vmatpush1.msra.mxu0 0.0
  %1170 = vmatprep.subr.mxu0 0.0
  %1171 = vmatpush1.msra.mxu0 0.0
  %1172 = vmatprep.subr.mxu0 0.0
  %1173 = vmatpush1.msra.mxu0 0.0
  %1174 = vmatprep.subr.mxu0 0.0
  %1175 = vmatpush1.msra.mxu0 0.0
  %1176 = vmatprep.subr.mxu0 0.0
  %1177 = vmatpush1.msra.mxu0 0.0
  %1178 = vmatprep.subr.mxu0 0.0
  %1179 = vmatpush1.msra.mxu0 0.0
  %1180 = vmatprep.subr.mxu0 0.0
  %1181 = vmatpush1.msra.mxu0 0.0
  %1182 = vmatprep.subr.mxu0 0.0
  %1183 = vmatpush1.msra.mxu0 0.0
  %1184 = vmatprep.subr.mxu0 0.0
  %1185 = vmatpush1.msra.mxu0 0.0
  %1186 = vmatprep.subr.mxu0 0.0
  %1187 = vmatpush1.msra.mxu0 0.0
  %1188 = vmatprep.subr.mxu0 0.0
  %1189 = vmatpush1.msra.mxu0 0.0
  %1190 = vmatprep.subr.mxu0 0.0
  %1191 = vmatpush1.msra.mxu0 0.0
  %1192 = vmatprep.subr.mxu0 0.0
  %1193 = vmatpush1.msra.mxu0 0.0
  %1194 = vmatprep.subr.mxu0 0.0
  %1195 = vmatpush1.msra.mxu0 0.0
  %1196 = vmatprep.subr.mxu0 0.0
  %1197 = vmatpush1.msra.mxu0 0.0
  %1198 = vmatprep.subr.mxu0 0.0
  %1199 = vmatpush1.msra.mxu0 0.0
  %1200 = vmatprep.subr.mxu0 0.0
  %1201 = vmatpush1.msra.mxu0 0.0
  %1202 = vmatprep.subr.mxu0 0.0
  %1203 = vmatpush1.msra.mxu0 0.0
  %1204 = vmatprep.subr.mxu0 0.0
  %1205 = vmatpush1.msra.mxu0 0.0
  %1206 = vmatprep.subr.mxu0 0.0
  %1207 = vmatpush1.msra.mxu0 0.0
  %1208 = vmatprep.subr.mxu0 0.0
  %1209 = vmatpush1.msra.mxu0 0.0
  %1210 = vmatprep.subr.mxu0 0.0
  %1211 = vmatpush1.msra.mxu0 0.0
  %1212 = vmatprep.mubr.f32.mxu0 0.0
  %1213 = vmatmul.mubr.f32.gmra.mrb[0].mxu0 %v1142
  %v1214 = vpop.f32.mrb[0].mxu0
  %v1215 = vadd.f32 0.0, %v1214
  %v1216 = vpop.f32.mrb[0].mxu0
  %1217 = vdwg.mxu0
  %v1218 = vxor.u32 %v1215, 2147483648
  %v1219 = vmul.f32 %v1218, 1.442695
  %v1220 = vpow.pop %v1219
  %v1221 = vadd.f32 %v1220, 1.0
  %v1222 = vrcp.pop %v1221
  %v1223 = vmul.f32 1.0, %v1222
  %v1226 = vunpack.c.l.s4 1966171168
  %v1227 = vunpack.c.0.s8 %v1226
  %v1228 = vlaneseq
  %v1229 = vshrl.u32 %v1228, 7
  %v1230 = vsub.s32 %v1227, %v1229
  %v1231 = vrot.slane %v1223, %v1230
  %v1232 = vcombine.high %v1231, %v1231
  %v1234 = vunpack.c.l.s4 1966171168
  %v1235 = vunpack.c.0.s8 %v1234
  %v1236 = vlaneseq
  %v1237 = vshrl.u32 %v1236, 7
  %v1238 = vsub.s32 %v1235, %v1237
  %v1239 = vrot.slane %v1231, %v1238
  %v1241 = vunpack.c.l.s4 1966171168
  %v1242 = vunpack.c.0.s8 %v1241
  %v1243 = vlaneseq
  %v1244 = vshrl.u32 %v1243, 7
  %v1245 = vsub.s32 %v1242, %v1244
  %v1246 = vrot.slane %v1232, %v1245
  %v1247 = vlaneseq
  %v1248 = vshrl.u32 %v1247, 7
  %v1249 = vsub.s32 0, %v1248
  %v1250 = vrot.slane %v1239, %v1249
  %v1251 = vlaneseq
  %v1252 = vshrl.u32 %v1251, 7
  %v1253 = vsub.s32 0, %v1252
  %v1254 = vrot.slane %v1246, %v1253
  %v1257 = vmul.f32 %v1033, %v1250
  %v1258 = vmul.f32 %v1034, %v1250
  %v1259 = vmul.f32 %v1035, %v1254
  %v1260 = vmul.f32 %v1036, %v1254
  %v1261 = vmul.f32 %v1257, 0.1
  %v1262 = vmul.f32 %v1258, 0.1
  %v1263 = vmul.f32 %v1259, 0.1
  %v1264 = vmul.f32 %v1260, 0.1
  %v1265 = vadd.f32 %v32, %v1261
  %v1266 = vadd.f32 %v33, %v1262
  %v1267 = vadd.f32 %v34, %v1263
  %v1268 = vadd.f32 %v35, %v1264
  %1269 = vst.msk [vmem:[%s9] sm:$0xff] %vm41, %v1265
  %1270 = vst.msk [vmem:[%s9 + $0x8] sm:$0xff] %vm41, %v1266
  %1271 = vst.msk [vmem:[%s9 + $0x10] sm:$0xff] %vm41, %v1267
  %1272 = vst.msk [vmem:[%s9 + $0x18] sm:$0xff] %vm41, %v1268
  // Predicated region
  $region38: #{residual_block.1} parent=0 // pred_check
    _
  $region39: #{residual_block.1} parent=0 // pred_check_branch
    %1274 = sbr.rel (0) target = $region41
  $region40: #{residual_block.1} parent=0 // pred_region
    _
  $region41: #{residual_block.1} parent=0 // pred_fallthru
    _
  // Predicated region
  $region42: #{residual_block.1} parent=0 // pred_check
    _
  $region43: #{residual_block.1} parent=0 // pred_check_branch
    %1276 = sbr.rel (0) target = $region45
  $region44: #{residual_block.1} parent=0 // pred_region
    _
  $region45: #{residual_block.1} parent=0 // pred_fallthru
    _

</llo_original>
